<compile_context>
chip_gen: v5e
topology: v5e:2x2
jax: 0.10.0
libtpu: 0.0.40
codegen_flags: <defaults>
</compile_context>

<pallas_src>
import functools

import jax
import jax.numpy as jnp
from jax import lax
from jax.experimental import pallas as pl
from jax.experimental.pallas import tpu as pltpu  # noqa: F401  (kept for parity)


# ---------------------------------------------------------------------------
# Pallas kernel: full GRU recurrence (unrolled in-kernel loop) + MLP head
# ---------------------------------------------------------------------------
def _gru_encoder_kernel(
    gi_r_ref,   # (S, B, H)  precomputed  x@W_ir + b_ir + b_hr   (flipped time)
    gi_z_ref,   # (S, B, H)  precomputed  x@W_iz + b_iz + b_hz
    gi_n_ref,   # (S, B, H)  precomputed  x@W_in + b_in
    whr_ref,    # (H, H)
    whz_ref,    # (H, H)
    whn_ref,    # (H, H)
    bhn_ref,    # (1, H)
    w1_ref,     # (H, H)
    b1_ref,     # (1, H)
    w2_ref,     # (H, H)
    b2_ref,     # (1, H)
    w3_ref,     # (H, 2L)
    b3_ref,     # (1, 2L)
    out_ref,    # out: (B, 2L)   [mean | log_std]
    *,
    seq_len,
    batch,
    hidden_dim,
):
    f32 = jnp.float32

    # Loop-constant loads / broadcasts hoisted out of the recurrence
    # (JAX does not CSE broadcast_in_dim inside the loop).
    whr = whr_ref[...]
    whz = whz_ref[...]
    whn = whn_ref[...]
    bhn = jnp.broadcast_to(bhn_ref[...], (batch, hidden_dim))

    def body(s, h):
        # Per-gate lane-dense slabs: no cross-lane extraction on the serial path.
        r = jax.nn.sigmoid(
            gi_r_ref[s] + jnp.dot(h, whr, preferred_element_type=f32)
        )
        z = jax.nn.sigmoid(
            gi_z_ref[s] + jnp.dot(h, whz, preferred_element_type=f32)
        )
        n = jnp.tanh(
            gi_n_ref[s] + r * (jnp.dot(h, whn, preferred_element_type=f32) + bhn)
        )
        return (1.0 - z) * n + z * h

    h0 = jnp.zeros((batch, hidden_dim), f32)
    h = lax.fori_loop(0, seq_len, body, h0, unroll=True)

    # MLP head on the final hidden state: Linear -> tanh -> Linear -> tanh -> Linear
    a1 = jnp.tanh(jnp.dot(h, w1_ref[...], preferred_element_type=f32) + b1_ref[...])
    a2 = jnp.tanh(jnp.dot(a1, w2_ref[...], preferred_element_type=f32) + b2_ref[...])
    out_ref[...] = jnp.dot(a2, w3_ref[...], preferred_element_type=f32) + b3_ref[...]


# ---------------------------------------------------------------------------
# Wrapper (glue: delta-t, concat, flip, hoisted input projection, pallas_call)
# ---------------------------------------------------------------------------
def rnn_encoder_forward(x, t, params, *, hidden_dim, latent_dim):
    """x: (S, B, D) float32, t: (S, B, 1) float32 -> (z0_mean, z0_log_std)."""
    S, B, D = x.shape
    H, L = hidden_dim, latent_dim

    # t[1:] = t[:-1] - t[1:]; t[0] = 0.0   (matches the torch module)
    dt = jnp.concatenate([jnp.zeros_like(t[:1]), t[:-1] - t[1:]], axis=0)
    xt = jnp.flip(jnp.concatenate([x, dt], axis=-1), axis=0)   # (S, B, D+1)

    # Hoisted non-recurrent input projection: ONE matmul over the whole
    # sequence (perf review item #2).  r/z hidden biases fold in here since
    # they only ever appear as additive terms inside sigmoid.
    gi = jnp.einsum("sbd,dg->sbg", xt, params["w_ih"]) + params["b_ih"]  # (S,B,3H)
    b_hh = params["b_hh"]
    gi_r = gi[..., :H] + b_hh[:, :H]
    gi_z = gi[..., H:2 * H] + b_hh[:, H:2 * H]
    gi_n = gi[..., 2 * H:]

    # Per-gate recurrent weight slabs (lane-dense, sliced once here, not per step).
    w_hh = params["w_hh"]
    whr, whz, whn = w_hh[:, :H], w_hh[:, H:2 * H], w_hh[:, 2 * H:]
    bhn = b_hh[:, 2 * H:]

    kernel = functools.partial(
        _gru_encoder_kernel, seq_len=S, batch=B, hidden_dim=H
    )

    # Single invocation (no grid): everything resident in VMEM, recurrence
    # fully unrolled inside the kernel -> no per-grid-step pipeline overhead.
    z0 = pl.pallas_call(
        kernel,
        out_shape=jax.ShapeDtypeStruct((B, 2 * L), jnp.float32),
    )(
        gi_r, gi_z, gi_n,
        whr, whz, whn, bhn,
        params["w1"], params["b1"],
        params["w2"], params["b2"],
        params["w3"], params["b3"],
    )

    # Single lane-denser output split in the wrapper (perf review item #4).
    return z0[:, :L], z0[:, L:]


# ---------------------------------------------------------------------------
# Pure-JAX reference (mirrors torch nn.GRU + Sequential MLP semantics)
# ---------------------------------------------------------------------------
def rnn_encoder_reference(x, t, params, *, hidden_dim, latent_dim):
    S, B, D = x.shape
    dt = jnp.concatenate([jnp.zeros_like(t[:1]), t[:-1] - t[1:]], axis=0)
    xt = jnp.flip(jnp.concatenate([x, dt], axis=-1), axis=0)

    H = hidden_dim
    h = jnp.zeros((B, H), jnp.float32)
    for s in range(S):
        xs = xt[s]
        gi = xs @ params["w_ih"] + params["b_ih"]
        gh = h @ params["w_hh"] + params["b_hh"]
        r = jax.nn.sigmoid(gi[:, :H] + gh[:, :H])
        z = jax.nn.sigmoid(gi[:, H:2 * H] + gh[:, H:2 * H])
        n = jnp.tanh(gi[:, 2 * H:] + r * gh[:, 2 * H:])
        h = (1.0 - z) * n + z * h
    a1 = jnp.tanh(h @ params["w1"] + params["b1"])
    a2 = jnp.tanh(a1 @ params["w2"] + params["b2"])
    z0 = a2 @ params["w3"] + params["b3"]
    return z0[:, :latent_dim], z0[:, latent_dim:]


# ---------------------------------------------------------------------------
# Deterministic parameter init (shapes per nn.GRU / nn.Linear in __init__)
# Gate order [r | z | n] along the 3H axis (PyTorch convention).
# ---------------------------------------------------------------------------
def init_params(key, input_dim, hidden_dim, latent_dim):
    Din = input_dim + 1
    H = hidden_dim
    L = latent_dim
    scale = 1.0 / jnp.sqrt(jnp.float32(H))
    keys = jax.random.split(key, 11)
    u = lambda k, shape: jax.random.uniform(
        k, shape, jnp.float32, minval=-scale, maxval=scale
    )
    return {
        "w_ih": u(keys[0], (Din, 3 * H)),
        "w_hh": u(keys[1], (H, 3 * H)),
        "b_ih": u(keys[2], (1, 3 * H)),
        "b_hh": u(keys[3], (1, 3 * H)),
        "w1":   u(keys[4], (H, H)),
        "b1":   u(keys[5], (1, H)),
        "w2":   u(keys[6], (H, H)),
        "b2":   u(keys[7], (1, H)),
        "w3":   u(keys[8], (H, 2 * L)),
        "b3":   u(keys[9], (1, 2 * L)),
    }


if __name__ == "__main__":
    # Small shapes implied by the forward pass: time-major sequence input.
    SEQ, BATCH, INPUT_DIM, HIDDEN_DIM, LATENT_DIM = 8, 2, 4, 32, 8

    key = jax.random.PRNGKey(0)
    kx, kt, kp = jax.random.split(key, 3)

    x = jax.random.normal(kx, (SEQ, BATCH, INPUT_DIM), jnp.float32)
    # monotone-ish timestamps, shape (SEQ, BATCH, 1)
    t = jnp.cumsum(
        jax.random.uniform(kt, (SEQ, BATCH, 1), jnp.float32, 0.1, 1.0), axis=0
    )

    params = init_params(kp, INPUT_DIM, HIDDEN_DIM, LATENT_DIM)

    z0_mean, z0_log_std = rnn_encoder_forward(
        x, t, params, hidden_dim=HIDDEN_DIM, latent_dim=LATENT_DIM
    )
    jax.block_until_ready((z0_mean, z0_log_std))

    ref_mean, ref_log_std = rnn_encoder_reference(
        x, t, params, hidden_dim=HIDDEN_DIM, latent_dim=LATENT_DIM
    )

    assert z0_mean.shape == (BATCH, LATENT_DIM)
    assert z0_log_std.shape == (BATCH, LATENT_DIM)
    assert jnp.allclose(z0_mean, ref_mean, atol=1e-4, rtol=1e-4)
    assert jnp.allclose(z0_log_std, ref_log_std, atol=1e-4, rtol=1e-4)

    print("KERNEL_OK")
</pallas_src>

<mosaic_0001>
module attributes {stable_mosaic.version = 11 : i64} {
  func.func @_gru_encoder_kernel(%arg0: memref<8x2x32xf32, #tpu.memory_space<vmem>>, %arg1: memref<8x2x32xf32, #tpu.memory_space<vmem>>, %arg2: memref<8x2x32xf32, #tpu.memory_space<vmem>>, %arg3: memref<32x32xf32, #tpu.memory_space<vmem>>, %arg4: memref<32x32xf32, #tpu.memory_space<vmem>>, %arg5: memref<32x32xf32, #tpu.memory_space<vmem>>, %arg6: memref<1x32xf32, #tpu.memory_space<vmem>>, %arg7: memref<32x32xf32, #tpu.memory_space<vmem>>, %arg8: memref<1x32xf32, #tpu.memory_space<vmem>>, %arg9: memref<32x32xf32, #tpu.memory_space<vmem>>, %arg10: memref<1x32xf32, #tpu.memory_space<vmem>>, %arg11: memref<32x16xf32, #tpu.memory_space<vmem>>, %arg12: memref<1x16xf32, #tpu.memory_space<vmem>>, %arg13: memref<2x16xf32, #tpu.memory_space<vmem>>) attributes {dimension_semantics = [], scalar_prefetch = 0 : i64, scratch_operands = 0 : i64, tpu.core_type = #tpu.core_type<tc>} {
    %c0 = arith.constant 0 : index
    %c0_0 = arith.constant 0 : index
    %0 = vector.load %arg3[%c0, %c0_0] : memref<32x32xf32, #tpu.memory_space<vmem>>, vector<32x32xf32>
    %c0_1 = arith.constant 0 : index
    %c0_2 = arith.constant 0 : index
    %1 = vector.load %arg4[%c0_1, %c0_2] : memref<32x32xf32, #tpu.memory_space<vmem>>, vector<32x32xf32>
    %c0_3 = arith.constant 0 : index
    %c0_4 = arith.constant 0 : index
    %2 = vector.load %arg5[%c0_3, %c0_4] : memref<32x32xf32, #tpu.memory_space<vmem>>, vector<32x32xf32>
    %c0_5 = arith.constant 0 : index
    %c0_6 = arith.constant 0 : index
    %3 = vector.load %arg6[%c0_5, %c0_6] : memref<1x32xf32, #tpu.memory_space<vmem>>, vector<1x32xf32>
    %4 = vector.shape_cast %3 : vector<1x32xf32> to vector<1x32xf32>
    %5 = vector.broadcast %4 : vector<1x32xf32> to vector<2x32xf32>
    %cst = arith.constant 0.000000e+00 : f32
    %6 = vector.broadcast %cst : f32 to vector<2x32xf32>
    %c0_i32 = arith.constant 0 : i32
    %7 = arith.index_cast %c0_i32 : i32 to index
    %c0_7 = arith.constant 0 : index
    %c0_8 = arith.constant 0 : index
    %8 = vector.load %arg0[%7, %c0_7, %c0_8] : memref<8x2x32xf32, #tpu.memory_space<vmem>>, vector<1x2x32xf32>
    %9 = vector.shape_cast %8 : vector<1x2x32xf32> to vector<2x32xf32>
    %cst_9 = arith.constant dense<0.000000e+00> : vector<2x32xf32>
    %10 = tpu.matmul %6, %0, %cst_9 {dimension_numbers = #tpu.dot_dimension_numbers<[1], [0], [0], [1], [0, 0, 1, 1], [], []>} : vector<2x32xf32>, vector<32x32xf32>, vector<2x32xf32> -> vector<2x32xf32>
    %11 = arith.addf %9, %10 : vector<2x32xf32>
    %12 = arith.negf %11 : vector<2x32xf32>
    %13 = math.exp %12 : vector<2x32xf32>
    %cst_10 = arith.constant 1.000000e+00 : f32
    %14 = vector.broadcast %cst_10 : f32 to vector<2x32xf32>
    %15 = arith.addf %14, %13 : vector<2x32xf32>
    %16 = arith.divf %14, %15 : vector<2x32xf32>
    %17 = arith.index_cast %c0_i32 : i32 to index
    %c0_11 = arith.constant 0 : index
    %c0_12 = arith.constant 0 : index
    %18 = vector.load %arg1[%17, %c0_11, %c0_12] : memref<8x2x32xf32, #tpu.memory_space<vmem>>, vector<1x2x32xf32>
    %19 = vector.shape_cast %18 : vector<1x2x32xf32> to vector<2x32xf32>
    %cst_13 = arith.constant dense<0.000000e+00> : vector<2x32xf32>
    %20 = tpu.matmul %6, %1, %cst_13 {dimension_numbers = #tpu.dot_dimension_numbers<[1], [0], [0], [1], [0, 0, 1, 1], [], []>} : vector<2x32xf32>, vector<32x32xf32>, vector<2x32xf32> -> vector<2x32xf32>
    %21 = arith.addf %19, %20 : vector<2x32xf32>
    %22 = arith.negf %21 : vector<2x32xf32>
    %23 = math.exp %22 : vector<2x32xf32>
    %cst_14 = arith.constant 1.000000e+00 : f32
    %24 = vector.broadcast %cst_14 : f32 to vector<2x32xf32>
    %25 = arith.addf %24, %23 : vector<2x32xf32>
    %26 = arith.divf %24, %25 : vector<2x32xf32>
    %27 = arith.index_cast %c0_i32 : i32 to index
    %c0_15 = arith.constant 0 : index
    %c0_16 = arith.constant 0 : index
    %28 = vector.load %arg2[%27, %c0_15, %c0_16] : memref<8x2x32xf32, #tpu.memory_space<vmem>>, vector<1x2x32xf32>
    %29 = vector.shape_cast %28 : vector<1x2x32xf32> to vector<2x32xf32>
    %cst_17 = arith.constant dense<0.000000e+00> : vector<2x32xf32>
    %30 = tpu.matmul %6, %2, %cst_17 {dimension_numbers = #tpu.dot_dimension_numbers<[1], [0], [0], [1], [0, 0, 1, 1], [], []>} : vector<2x32xf32>, vector<32x32xf32>, vector<2x32xf32> -> vector<2x32xf32>
    %31 = arith.addf %30, %5 : vector<2x32xf32>
    %32 = arith.mulf %16, %31 : vector<2x32xf32>
    %33 = arith.addf %29, %32 : vector<2x32xf32>
    %34 = math.tanh %33 : vector<2x32xf32>
    %cst_18 = arith.constant 1.000000e+00 : f32
    %35 = vector.broadcast %cst_18 : f32 to vector<2x32xf32>
    %36 = arith.subf %35, %26 : vector<2x32xf32>
    %37 = arith.mulf %36, %34 : vector<2x32xf32>
    %38 = arith.mulf %26, %6 : vector<2x32xf32>
    %39 = arith.addf %37, %38 : vector<2x32xf32>
    %c1_i32 = arith.constant 1 : i32
    %40 = arith.index_cast %c1_i32 : i32 to index
    %c0_19 = arith.constant 0 : index
    %c0_20 = arith.constant 0 : index
    %41 = vector.load %arg0[%40, %c0_19, %c0_20] : memref<8x2x32xf32, #tpu.memory_space<vmem>>, vector<1x2x32xf32>
    %42 = vector.shape_cast %41 : vector<1x2x32xf32> to vector<2x32xf32>
    %cst_21 = arith.constant dense<0.000000e+00> : vector<2x32xf32>
    %43 = tpu.matmul %39, %0, %cst_21 {dimension_numbers = #tpu.dot_dimension_numbers<[1], [0], [0], [1], [0, 0, 1, 1], [], []>} : vector<2x32xf32>, vector<32x32xf32>, vector<2x32xf32> -> vector<2x32xf32>
    %44 = arith.addf %42, %43 : vector<2x32xf32>
    %45 = arith.negf %44 : vector<2x32xf32>
    %46 = math.exp %45 : vector<2x32xf32>
    %cst_22 = arith.constant 1.000000e+00 : f32
    %47 = vector.broadcast %cst_22 : f32 to vector<2x32xf32>
    %48 = arith.addf %47, %46 : vector<2x32xf32>
    %49 = arith.divf %47, %48 : vector<2x32xf32>
    %50 = arith.index_cast %c1_i32 : i32 to index
    %c0_23 = arith.constant 0 : index
    %c0_24 = arith.constant 0 : index
    %51 = vector.load %arg1[%50, %c0_23, %c0_24] : memref<8x2x32xf32, #tpu.memory_space<vmem>>, vector<1x2x32xf32>
    %52 = vector.shape_cast %51 : vector<1x2x32xf32> to vector<2x32xf32>
    %cst_25 = arith.constant dense<0.000000e+00> : vector<2x32xf32>
    %53 = tpu.matmul %39, %1, %cst_25 {dimension_numbers = #tpu.dot_dimension_numbers<[1], [0], [0], [1], [0, 0, 1, 1], [], []>} : vector<2x32xf32>, vector<32x32xf32>, vector<2x32xf32> -> vector<2x32xf32>
    %54 = arith.addf %52, %53 : vector<2x32xf32>
    %55 = arith.negf %54 : vector<2x32xf32>
    %56 = math.exp %55 : vector<2x32xf32>
    %cst_26 = arith.constant 1.000000e+00 : f32
    %57 = vector.broadcast %cst_26 : f32 to vector<2x32xf32>
    %58 = arith.addf %57, %56 : vector<2x32xf32>
    %59 = arith.divf %57, %58 : vector<2x32xf32>
    %60 = arith.index_cast %c1_i32 : i32 to index
    %c0_27 = arith.constant 0 : index
    %c0_28 = arith.constant 0 : index
    %61 = vector.load %arg2[%60, %c0_27, %c0_28] : memref<8x2x32xf32, #tpu.memory_space<vmem>>, vector<1x2x32xf32>
    %62 = vector.shape_cast %61 : vector<1x2x32xf32> to vector<2x32xf32>
    %cst_29 = arith.constant dense<0.000000e+00> : vector<2x32xf32>
    %63 = tpu.matmul %39, %2, %cst_29 {dimension_numbers = #tpu.dot_dimension_numbers<[1], [0], [0], [1], [0, 0, 1, 1], [], []>} : vector<2x32xf32>, vector<32x32xf32>, vector<2x32xf32> -> vector<2x32xf32>
    %64 = arith.addf %63, %5 : vector<2x32xf32>
    %65 = arith.mulf %49, %64 : vector<2x32xf32>
    %66 = arith.addf %62, %65 : vector<2x32xf32>
    %67 = math.tanh %66 : vector<2x32xf32>
    %cst_30 = arith.constant 1.000000e+00 : f32
    %68 = vector.broadcast %cst_30 : f32 to vector<2x32xf32>
    %69 = arith.subf %68, %59 : vector<2x32xf32>
    %70 = arith.mulf %69, %67 : vector<2x32xf32>
    %71 = arith.mulf %59, %39 : vector<2x32xf32>
    %72 = arith.addf %70, %71 : vector<2x32xf32>
    %c2_i32 = arith.constant 2 : i32
    %73 = arith.index_cast %c2_i32 : i32 to index
    %c0_31 = arith.constant 0 : index
    %c0_32 = arith.constant 0 : index
    %74 = vector.load %arg0[%73, %c0_31, %c0_32] : memref<8x2x32xf32, #tpu.memory_space<vmem>>, vector<1x2x32xf32>
    %75 = vector.shape_cast %74 : vector<1x2x32xf32> to vector<2x32xf32>
    %cst_33 = arith.constant dense<0.000000e+00> : vector<2x32xf32>
    %76 = tpu.matmul %72, %0, %cst_33 {dimension_numbers = #tpu.dot_dimension_numbers<[1], [0], [0], [1], [0, 0, 1, 1], [], []>} : vector<2x32xf32>, vector<32x32xf32>, vector<2x32xf32> -> vector<2x32xf32>
    %77 = arith.addf %75, %76 : vector<2x32xf32>
    %78 = arith.negf %77 : vector<2x32xf32>
    %79 = math.exp %78 : vector<2x32xf32>
    %cst_34 = arith.constant 1.000000e+00 : f32
    %80 = vector.broadcast %cst_34 : f32 to vector<2x32xf32>
    %81 = arith.addf %80, %79 : vector<2x32xf32>
    %82 = arith.divf %80, %81 : vector<2x32xf32>
    %83 = arith.index_cast %c2_i32 : i32 to index
    %c0_35 = arith.constant 0 : index
    %c0_36 = arith.constant 0 : index
    %84 = vector.load %arg1[%83, %c0_35, %c0_36] : memref<8x2x32xf32, #tpu.memory_space<vmem>>, vector<1x2x32xf32>
    %85 = vector.shape_cast %84 : vector<1x2x32xf32> to vector<2x32xf32>
    %cst_37 = arith.constant dense<0.000000e+00> : vector<2x32xf32>
    %86 = tpu.matmul %72, %1, %cst_37 {dimension_numbers = #tpu.dot_dimension_numbers<[1], [0], [0], [1], [0, 0, 1, 1], [], []>} : vector<2x32xf32>, vector<32x32xf32>, vector<2x32xf32> -> vector<2x32xf32>
    %87 = arith.addf %85, %86 : vector<2x32xf32>
    %88 = arith.negf %87 : vector<2x32xf32>
    %89 = math.exp %88 : vector<2x32xf32>
    %cst_38 = arith.constant 1.000000e+00 : f32
    %90 = vector.broadcast %cst_38 : f32 to vector<2x32xf32>
    %91 = arith.addf %90, %89 : vector<2x32xf32>
    %92 = arith.divf %90, %91 : vector<2x32xf32>
    %93 = arith.index_cast %c2_i32 : i32 to index
    %c0_39 = arith.constant 0 : index
    %c0_40 = arith.constant 0 : index
    %94 = vector.load %arg2[%93, %c0_39, %c0_40] : memref<8x2x32xf32, #tpu.memory_space<vmem>>, vector<1x2x32xf32>
    %95 = vector.shape_cast %94 : vector<1x2x32xf32> to vector<2x32xf32>
    %cst_41 = arith.constant dense<0.000000e+00> : vector<2x32xf32>
    %96 = tpu.matmul %72, %2, %cst_41 {dimension_numbers = #tpu.dot_dimension_numbers<[1], [0], [0], [1], [0, 0, 1, 1], [], []>} : vector<2x32xf32>, vector<32x32xf32>, vector<2x32xf32> -> vector<2x32xf32>
    %97 = arith.addf %96, %5 : vector<2x32xf32>
    %98 = arith.mulf %82, %97 : vector<2x32xf32>
    %99 = arith.addf %95, %98 : vector<2x32xf32>
    %100 = math.tanh %99 : vector<2x32xf32>
    %cst_42 = arith.constant 1.000000e+00 : f32
    %101 = vector.broadcast %cst_42 : f32 to vector<2x32xf32>
    %102 = arith.subf %101, %92 : vector<2x32xf32>
    %103 = arith.mulf %102, %100 : vector<2x32xf32>
    %104 = arith.mulf %92, %72 : vector<2x32xf32>
    %105 = arith.addf %103, %104 : vector<2x32xf32>
    %c3_i32 = arith.constant 3 : i32
    %106 = arith.index_cast %c3_i32 : i32 to index
    %c0_43 = arith.constant 0 : index
    %c0_44 = arith.constant 0 : index
    %107 = vector.load %arg0[%106, %c0_43, %c0_44] : memref<8x2x32xf32, #tpu.memory_space<vmem>>, vector<1x2x32xf32>
    %108 = vector.shape_cast %107 : vector<1x2x32xf32> to vector<2x32xf32>
    %cst_45 = arith.constant dense<0.000000e+00> : vector<2x32xf32>
    %109 = tpu.matmul %105, %0, %cst_45 {dimension_numbers = #tpu.dot_dimension_numbers<[1], [0], [0], [1], [0, 0, 1, 1], [], []>} : vector<2x32xf32>, vector<32x32xf32>, vector<2x32xf32> -> vector<2x32xf32>
    %110 = arith.addf %108, %109 : vector<2x32xf32>
    %111 = arith.negf %110 : vector<2x32xf32>
    %112 = math.exp %111 : vector<2x32xf32>
    %cst_46 = arith.constant 1.000000e+00 : f32
    %113 = vector.broadcast %cst_46 : f32 to vector<2x32xf32>
    %114 = arith.addf %113, %112 : vector<2x32xf32>
    %115 = arith.divf %113, %114 : vector<2x32xf32>
    %116 = arith.index_cast %c3_i32 : i32 to index
    %c0_47 = arith.constant 0 : index
    %c0_48 = arith.constant 0 : index
    %117 = vector.load %arg1[%116, %c0_47, %c0_48] : memref<8x2x32xf32, #tpu.memory_space<vmem>>, vector<1x2x32xf32>
    %118 = vector.shape_cast %117 : vector<1x2x32xf32> to vector<2x32xf32>
    %cst_49 = arith.constant dense<0.000000e+00> : vector<2x32xf32>
    %119 = tpu.matmul %105, %1, %cst_49 {dimension_numbers = #tpu.dot_dimension_numbers<[1], [0], [0], [1], [0, 0, 1, 1], [], []>} : vector<2x32xf32>, vector<32x32xf32>, vector<2x32xf32> -> vector<2x32xf32>
    %120 = arith.addf %118, %119 : vector<2x32xf32>
    %121 = arith.negf %120 : vector<2x32xf32>
    %122 = math.exp %121 : vector<2x32xf32>
    %cst_50 = arith.constant 1.000000e+00 : f32
    %123 = vector.broadcast %cst_50 : f32 to vector<2x32xf32>
    %124 = arith.addf %123, %122 : vector<2x32xf32>
    %125 = arith.divf %123, %124 : vector<2x32xf32>
    %126 = arith.index_cast %c3_i32 : i32 to index
    %c0_51 = arith.constant 0 : index
    %c0_52 = arith.constant 0 : index
    %127 = vector.load %arg2[%126, %c0_51, %c0_52] : memref<8x2x32xf32, #tpu.memory_space<vmem>>, vector<1x2x32xf32>
    %128 = vector.shape_cast %127 : vector<1x2x32xf32> to vector<2x32xf32>
    %cst_53 = arith.constant dense<0.000000e+00> : vector<2x32xf32>
    %129 = tpu.matmul %105, %2, %cst_53 {dimension_numbers = #tpu.dot_dimension_numbers<[1], [0], [0], [1], [0, 0, 1, 1], [], []>} : vector<2x32xf32>, vector<32x32xf32>, vector<2x32xf32> -> vector<2x32xf32>
    %130 = arith.addf %129, %5 : vector<2x32xf32>
    %131 = arith.mulf %115, %130 : vector<2x32xf32>
    %132 = arith.addf %128, %131 : vector<2x32xf32>
    %133 = math.tanh %132 : vector<2x32xf32>
    %cst_54 = arith.constant 1.000000e+00 : f32
    %134 = vector.broadcast %cst_54 : f32 to vector<2x32xf32>
    %135 = arith.subf %134, %125 : vector<2x32xf32>
    %136 = arith.mulf %135, %133 : vector<2x32xf32>
    %137 = arith.mulf %125, %105 : vector<2x32xf32>
    %138 = arith.addf %136, %137 : vector<2x32xf32>
    %c4_i32 = arith.constant 4 : i32
    %139 = arith.index_cast %c4_i32 : i32 to index
    %c0_55 = arith.constant 0 : index
    %c0_56 = arith.constant 0 : index
    %140 = vector.load %arg0[%139, %c0_55, %c0_56] : memref<8x2x32xf32, #tpu.memory_space<vmem>>, vector<1x2x32xf32>
    %141 = vector.shape_cast %140 : vector<1x2x32xf32> to vector<2x32xf32>
    %cst_57 = arith.constant dense<0.000000e+00> : vector<2x32xf32>
    %142 = tpu.matmul %138, %0, %cst_57 {dimension_numbers = #tpu.dot_dimension_numbers<[1], [0], [0], [1], [0, 0, 1, 1], [], []>} : vector<2x32xf32>, vector<32x32xf32>, vector<2x32xf32> -> vector<2x32xf32>
    %143 = arith.addf %141, %142 : vector<2x32xf32>
    %144 = arith.negf %143 : vector<2x32xf32>
    %145 = math.exp %144 : vector<2x32xf32>
    %cst_58 = arith.constant 1.000000e+00 : f32
    %146 = vector.broadcast %cst_58 : f32 to vector<2x32xf32>
    %147 = arith.addf %146, %145 : vector<2x32xf32>
    %148 = arith.divf %146, %147 : vector<2x32xf32>
    %149 = arith.index_cast %c4_i32 : i32 to index
    %c0_59 = arith.constant 0 : index
    %c0_60 = arith.constant 0 : index
    %150 = vector.load %arg1[%149, %c0_59, %c0_60] : memref<8x2x32xf32, #tpu.memory_space<vmem>>, vector<1x2x32xf32>
    %151 = vector.shape_cast %150 : vector<1x2x32xf32> to vector<2x32xf32>
    %cst_61 = arith.constant dense<0.000000e+00> : vector<2x32xf32>
    %152 = tpu.matmul %138, %1, %cst_61 {dimension_numbers = #tpu.dot_dimension_numbers<[1], [0], [0], [1], [0, 0, 1, 1], [], []>} : vector<2x32xf32>, vector<32x32xf32>, vector<2x32xf32> -> vector<2x32xf32>
    %153 = arith.addf %151, %152 : vector<2x32xf32>
    %154 = arith.negf %153 : vector<2x32xf32>
    %155 = math.exp %154 : vector<2x32xf32>
    %cst_62 = arith.constant 1.000000e+00 : f32
    %156 = vector.broadcast %cst_62 : f32 to vector<2x32xf32>
    %157 = arith.addf %156, %155 : vector<2x32xf32>
    %158 = arith.divf %156, %157 : vector<2x32xf32>
    %159 = arith.index_cast %c4_i32 : i32 to index
    %c0_63 = arith.constant 0 : index
    %c0_64 = arith.constant 0 : index
    %160 = vector.load %arg2[%159, %c0_63, %c0_64] : memref<8x2x32xf32, #tpu.memory_space<vmem>>, vector<1x2x32xf32>
    %161 = vector.shape_cast %160 : vector<1x2x32xf32> to vector<2x32xf32>
    %cst_65 = arith.constant dense<0.000000e+00> : vector<2x32xf32>
    %162 = tpu.matmul %138, %2, %cst_65 {dimension_numbers = #tpu.dot_dimension_numbers<[1], [0], [0], [1], [0, 0, 1, 1], [], []>} : vector<2x32xf32>, vector<32x32xf32>, vector<2x32xf32> -> vector<2x32xf32>
    %163 = arith.addf %162, %5 : vector<2x32xf32>
    %164 = arith.mulf %148, %163 : vector<2x32xf32>
    %165 = arith.addf %161, %164 : vector<2x32xf32>
    %166 = math.tanh %165 : vector<2x32xf32>
    %cst_66 = arith.constant 1.000000e+00 : f32
    %167 = vector.broadcast %cst_66 : f32 to vector<2x32xf32>
    %168 = arith.subf %167, %158 : vector<2x32xf32>
    %169 = arith.mulf %168, %166 : vector<2x32xf32>
    %170 = arith.mulf %158, %138 : vector<2x32xf32>
    %171 = arith.addf %169, %170 : vector<2x32xf32>
    %c5_i32 = arith.constant 5 : i32
    %172 = arith.index_cast %c5_i32 : i32 to index
    %c0_67 = arith.constant 0 : index
    %c0_68 = arith.constant 0 : index
    %173 = vector.load %arg0[%172, %c0_67, %c0_68] : memref<8x2x32xf32, #tpu.memory_space<vmem>>, vector<1x2x32xf32>
    %174 = vector.shape_cast %173 : vector<1x2x32xf32> to vector<2x32xf32>
    %cst_69 = arith.constant dense<0.000000e+00> : vector<2x32xf32>
    %175 = tpu.matmul %171, %0, %cst_69 {dimension_numbers = #tpu.dot_dimension_numbers<[1], [0], [0], [1], [0, 0, 1, 1], [], []>} : vector<2x32xf32>, vector<32x32xf32>, vector<2x32xf32> -> vector<2x32xf32>
    %176 = arith.addf %174, %175 : vector<2x32xf32>
    %177 = arith.negf %176 : vector<2x32xf32>
    %178 = math.exp %177 : vector<2x32xf32>
    %cst_70 = arith.constant 1.000000e+00 : f32
    %179 = vector.broadcast %cst_70 : f32 to vector<2x32xf32>
    %180 = arith.addf %179, %178 : vector<2x32xf32>
    %181 = arith.divf %179, %180 : vector<2x32xf32>
    %182 = arith.index_cast %c5_i32 : i32 to index
    %c0_71 = arith.constant 0 : index
    %c0_72 = arith.constant 0 : index
    %183 = vector.load %arg1[%182, %c0_71, %c0_72] : memref<8x2x32xf32, #tpu.memory_space<vmem>>, vector<1x2x32xf32>
    %184 = vector.shape_cast %183 : vector<1x2x32xf32> to vector<2x32xf32>
    %cst_73 = arith.constant dense<0.000000e+00> : vector<2x32xf32>
    %185 = tpu.matmul %171, %1, %cst_73 {dimension_numbers = #tpu.dot_dimension_numbers<[1], [0], [0], [1], [0, 0, 1, 1], [], []>} : vector<2x32xf32>, vector<32x32xf32>, vector<2x32xf32> -> vector<2x32xf32>
    %186 = arith.addf %184, %185 : vector<2x32xf32>
    %187 = arith.negf %186 : vector<2x32xf32>
    %188 = math.exp %187 : vector<2x32xf32>
    %cst_74 = arith.constant 1.000000e+00 : f32
    %189 = vector.broadcast %cst_74 : f32 to vector<2x32xf32>
    %190 = arith.addf %189, %188 : vector<2x32xf32>
    %191 = arith.divf %189, %190 : vector<2x32xf32>
    %192 = arith.index_cast %c5_i32 : i32 to index
    %c0_75 = arith.constant 0 : index
    %c0_76 = arith.constant 0 : index
    %193 = vector.load %arg2[%192, %c0_75, %c0_76] : memref<8x2x32xf32, #tpu.memory_space<vmem>>, vector<1x2x32xf32>
    %194 = vector.shape_cast %193 : vector<1x2x32xf32> to vector<2x32xf32>
    %cst_77 = arith.constant dense<0.000000e+00> : vector<2x32xf32>
    %195 = tpu.matmul %171, %2, %cst_77 {dimension_numbers = #tpu.dot_dimension_numbers<[1], [0], [0], [1], [0, 0, 1, 1], [], []>} : vector<2x32xf32>, vector<32x32xf32>, vector<2x32xf32> -> vector<2x32xf32>
    %196 = arith.addf %195, %5 : vector<2x32xf32>
    %197 = arith.mulf %181, %196 : vector<2x32xf32>
    %198 = arith.addf %194, %197 : vector<2x32xf32>
    %199 = math.tanh %198 : vector<2x32xf32>
    %cst_78 = arith.constant 1.000000e+00 : f32
    %200 = vector.broadcast %cst_78 : f32 to vector<2x32xf32>
    %201 = arith.subf %200, %191 : vector<2x32xf32>
    %202 = arith.mulf %201, %199 : vector<2x32xf32>
    %203 = arith.mulf %191, %171 : vector<2x32xf32>
    %204 = arith.addf %202, %203 : vector<2x32xf32>
    %c6_i32 = arith.constant 6 : i32
    %205 = arith.index_cast %c6_i32 : i32 to index
    %c0_79 = arith.constant 0 : index
    %c0_80 = arith.constant 0 : index
    %206 = vector.load %arg0[%205, %c0_79, %c0_80] : memref<8x2x32xf32, #tpu.memory_space<vmem>>, vector<1x2x32xf32>
    %207 = vector.shape_cast %206 : vector<1x2x32xf32> to vector<2x32xf32>
    %cst_81 = arith.constant dense<0.000000e+00> : vector<2x32xf32>
    %208 = tpu.matmul %204, %0, %cst_81 {dimension_numbers = #tpu.dot_dimension_numbers<[1], [0], [0], [1], [0, 0, 1, 1], [], []>} : vector<2x32xf32>, vector<32x32xf32>, vector<2x32xf32> -> vector<2x32xf32>
    %209 = arith.addf %207, %208 : vector<2x32xf32>
    %210 = arith.negf %209 : vector<2x32xf32>
    %211 = math.exp %210 : vector<2x32xf32>
    %cst_82 = arith.constant 1.000000e+00 : f32
    %212 = vector.broadcast %cst_82 : f32 to vector<2x32xf32>
    %213 = arith.addf %212, %211 : vector<2x32xf32>
    %214 = arith.divf %212, %213 : vector<2x32xf32>
    %215 = arith.index_cast %c6_i32 : i32 to index
    %c0_83 = arith.constant 0 : index
    %c0_84 = arith.constant 0 : index
    %216 = vector.load %arg1[%215, %c0_83, %c0_84] : memref<8x2x32xf32, #tpu.memory_space<vmem>>, vector<1x2x32xf32>
    %217 = vector.shape_cast %216 : vector<1x2x32xf32> to vector<2x32xf32>
    %cst_85 = arith.constant dense<0.000000e+00> : vector<2x32xf32>
    %218 = tpu.matmul %204, %1, %cst_85 {dimension_numbers = #tpu.dot_dimension_numbers<[1], [0], [0], [1], [0, 0, 1, 1], [], []>} : vector<2x32xf32>, vector<32x32xf32>, vector<2x32xf32> -> vector<2x32xf32>
    %219 = arith.addf %217, %218 : vector<2x32xf32>
    %220 = arith.negf %219 : vector<2x32xf32>
    %221 = math.exp %220 : vector<2x32xf32>
    %cst_86 = arith.constant 1.000000e+00 : f32
    %222 = vector.broadcast %cst_86 : f32 to vector<2x32xf32>
    %223 = arith.addf %222, %221 : vector<2x32xf32>
    %224 = arith.divf %222, %223 : vector<2x32xf32>
    %225 = arith.index_cast %c6_i32 : i32 to index
    %c0_87 = arith.constant 0 : index
    %c0_88 = arith.constant 0 : index
    %226 = vector.load %arg2[%225, %c0_87, %c0_88] : memref<8x2x32xf32, #tpu.memory_space<vmem>>, vector<1x2x32xf32>
    %227 = vector.shape_cast %226 : vector<1x2x32xf32> to vector<2x32xf32>
    %cst_89 = arith.constant dense<0.000000e+00> : vector<2x32xf32>
    %228 = tpu.matmul %204, %2, %cst_89 {dimension_numbers = #tpu.dot_dimension_numbers<[1], [0], [0], [1], [0, 0, 1, 1], [], []>} : vector<2x32xf32>, vector<32x32xf32>, vector<2x32xf32> -> vector<2x32xf32>
    %229 = arith.addf %228, %5 : vector<2x32xf32>
    %230 = arith.mulf %214, %229 : vector<2x32xf32>
    %231 = arith.addf %227, %230 : vector<2x32xf32>
    %232 = math.tanh %231 : vector<2x32xf32>
    %cst_90 = arith.constant 1.000000e+00 : f32
    %233 = vector.broadcast %cst_90 : f32 to vector<2x32xf32>
    %234 = arith.subf %233, %224 : vector<2x32xf32>
    %235 = arith.mulf %234, %232 : vector<2x32xf32>
    %236 = arith.mulf %224, %204 : vector<2x32xf32>
    %237 = arith.addf %235, %236 : vector<2x32xf32>
    %c7_i32 = arith.constant 7 : i32
    %238 = arith.index_cast %c7_i32 : i32 to index
    %c0_91 = arith.constant 0 : index
    %c0_92 = arith.constant 0 : index
    %239 = vector.load %arg0[%238, %c0_91, %c0_92] : memref<8x2x32xf32, #tpu.memory_space<vmem>>, vector<1x2x32xf32>
    %240 = vector.shape_cast %239 : vector<1x2x32xf32> to vector<2x32xf32>
    %cst_93 = arith.constant dense<0.000000e+00> : vector<2x32xf32>
    %241 = tpu.matmul %237, %0, %cst_93 {dimension_numbers = #tpu.dot_dimension_numbers<[1], [0], [0], [1], [0, 0, 1, 1], [], []>} : vector<2x32xf32>, vector<32x32xf32>, vector<2x32xf32> -> vector<2x32xf32>
    %242 = arith.addf %240, %241 : vector<2x32xf32>
    %243 = arith.negf %242 : vector<2x32xf32>
    %244 = math.exp %243 : vector<2x32xf32>
    %cst_94 = arith.constant 1.000000e+00 : f32
    %245 = vector.broadcast %cst_94 : f32 to vector<2x32xf32>
    %246 = arith.addf %245, %244 : vector<2x32xf32>
    %247 = arith.divf %245, %246 : vector<2x32xf32>
    %248 = arith.index_cast %c7_i32 : i32 to index
    %c0_95 = arith.constant 0 : index
    %c0_96 = arith.constant 0 : index
    %249 = vector.load %arg1[%248, %c0_95, %c0_96] : memref<8x2x32xf32, #tpu.memory_space<vmem>>, vector<1x2x32xf32>
    %250 = vector.shape_cast %249 : vector<1x2x32xf32> to vector<2x32xf32>
    %cst_97 = arith.constant dense<0.000000e+00> : vector<2x32xf32>
    %251 = tpu.matmul %237, %1, %cst_97 {dimension_numbers = #tpu.dot_dimension_numbers<[1], [0], [0], [1], [0, 0, 1, 1], [], []>} : vector<2x32xf32>, vector<32x32xf32>, vector<2x32xf32> -> vector<2x32xf32>
    %252 = arith.addf %250, %251 : vector<2x32xf32>
    %253 = arith.negf %252 : vector<2x32xf32>
    %254 = math.exp %253 : vector<2x32xf32>
    %cst_98 = arith.constant 1.000000e+00 : f32
    %255 = vector.broadcast %cst_98 : f32 to vector<2x32xf32>
    %256 = arith.addf %255, %254 : vector<2x32xf32>
    %257 = arith.divf %255, %256 : vector<2x32xf32>
    %258 = arith.index_cast %c7_i32 : i32 to index
    %c0_99 = arith.constant 0 : index
    %c0_100 = arith.constant 0 : index
    %259 = vector.load %arg2[%258, %c0_99, %c0_100] : memref<8x2x32xf32, #tpu.memory_space<vmem>>, vector<1x2x32xf32>
    %260 = vector.shape_cast %259 : vector<1x2x32xf32> to vector<2x32xf32>
    %cst_101 = arith.constant dense<0.000000e+00> : vector<2x32xf32>
    %261 = tpu.matmul %237, %2, %cst_101 {dimension_numbers = #tpu.dot_dimension_numbers<[1], [0], [0], [1], [0, 0, 1, 1], [], []>} : vector<2x32xf32>, vector<32x32xf32>, vector<2x32xf32> -> vector<2x32xf32>
    %262 = arith.addf %261, %5 : vector<2x32xf32>
    %263 = arith.mulf %247, %262 : vector<2x32xf32>
    %264 = arith.addf %260, %263 : vector<2x32xf32>
    %265 = math.tanh %264 : vector<2x32xf32>
    %cst_102 = arith.constant 1.000000e+00 : f32
    %266 = vector.broadcast %cst_102 : f32 to vector<2x32xf32>
    %267 = arith.subf %266, %257 : vector<2x32xf32>
    %268 = arith.mulf %267, %265 : vector<2x32xf32>
    %269 = arith.mulf %257, %237 : vector<2x32xf32>
    %270 = arith.addf %268, %269 : vector<2x32xf32>
    %c8_i32 = arith.constant 8 : i32
    %c0_103 = arith.constant 0 : index
    %c0_104 = arith.constant 0 : index
    %271 = vector.load %arg7[%c0_103, %c0_104] : memref<32x32xf32, #tpu.memory_space<vmem>>, vector<32x32xf32>
    %cst_105 = arith.constant dense<0.000000e+00> : vector<2x32xf32>
    %272 = tpu.matmul %270, %271, %cst_105 {dimension_numbers = #tpu.dot_dimension_numbers<[1], [0], [0], [1], [0, 0, 1, 1], [], []>} : vector<2x32xf32>, vector<32x32xf32>, vector<2x32xf32> -> vector<2x32xf32>
    %c0_106 = arith.constant 0 : index
    %c0_107 = arith.constant 0 : index
    %273 = vector.load %arg8[%c0_106, %c0_107] : memref<1x32xf32, #tpu.memory_space<vmem>>, vector<1x32xf32>
    %274 = vector.broadcast %273 : vector<1x32xf32> to vector<2x32xf32>
    %275 = arith.addf %272, %274 : vector<2x32xf32>
    %276 = math.tanh %275 : vector<2x32xf32>
    %c0_108 = arith.constant 0 : index
    %c0_109 = arith.constant 0 : index
    %277 = vector.load %arg9[%c0_108, %c0_109] : memref<32x32xf32, #tpu.memory_space<vmem>>, vector<32x32xf32>
    %cst_110 = arith.constant dense<0.000000e+00> : vector<2x32xf32>
    %278 = tpu.matmul %276, %277, %cst_110 {dimension_numbers = #tpu.dot_dimension_numbers<[1], [0], [0], [1], [0, 0, 1, 1], [], []>} : vector<2x32xf32>, vector<32x32xf32>, vector<2x32xf32> -> vector<2x32xf32>
    %c0_111 = arith.constant 0 : index
    %c0_112 = arith.constant 0 : index
    %279 = vector.load %arg10[%c0_111, %c0_112] : memref<1x32xf32, #tpu.memory_space<vmem>>, vector<1x32xf32>
    %280 = vector.broadcast %279 : vector<1x32xf32> to vector<2x32xf32>
    %281 = arith.addf %278, %280 : vector<2x32xf32>
    %282 = math.tanh %281 : vector<2x32xf32>
    %c0_113 = arith.constant 0 : index
    %c0_114 = arith.constant 0 : index
    %283 = vector.load %arg11[%c0_113, %c0_114] : memref<32x16xf32, #tpu.memory_space<vmem>>, vector<32x16xf32>
    %cst_115 = arith.constant dense<0.000000e+00> : vector<2x16xf32>
    %284 = tpu.matmul %282, %283, %cst_115 {dimension_numbers = #tpu.dot_dimension_numbers<[1], [0], [0], [1], [0, 0, 1, 1], [], []>} : vector<2x32xf32>, vector<32x16xf32>, vector<2x16xf32> -> vector<2x16xf32>
    %c0_116 = arith.constant 0 : index
    %c0_117 = arith.constant 0 : index
    %285 = vector.load %arg12[%c0_116, %c0_117] : memref<1x16xf32, #tpu.memory_space<vmem>>, vector<1x16xf32>
    %286 = vector.broadcast %285 : vector<1x16xf32> to vector<2x16xf32>
    %287 = arith.addf %284, %286 : vector<2x16xf32>
    %c0_118 = arith.constant 0 : index
    %c0_119 = arith.constant 0 : index
    %288 = vector.load %arg13[%c0_118, %c0_119] : memref<2x16xf32, #tpu.memory_space<vmem>>, vector<2x16xf32>
    tpu.vector_store %arg13[%c0_118, %c0_119], %287 {strides = array<i32>} : memref<2x16xf32, #tpu.memory_space<vmem>>, vector<2x16xf32>,
    return
  }
}

</mosaic_0001>

<llo_original>
// kernel: tpu_custom_call.1
$region0: #{tpu_custom_call.1}
  #allocation0 [shape = 'u32[]', space=smem, size = 0x4, offset = 0x4, fixed_abs, tag = 'smem constant byte address 0x4 - core index']
  #allocation1 [shape = 'u32[72,128]{1,0:T(1,128)}', space=vmem, size = 0x9000, scoped, tag = 'internal scratch']
  %s0 = inlined_call_operand.vmem [shape: f32[8,2,32], index: 0, kind: input, shape index: {}]
  %s1 = inlined_call_operand.hbm [shape: f32[8,2,32], index: 1, kind: input, shape index: {}]
  %s2 = inlined_call_operand.hbm [shape: f32[8,2,32], index: 2, kind: input, shape index: {}]
  %s3 = inlined_call_operand.vmem [shape: f32[32,32], index: 3, kind: input, shape index: {}]
  %s4 = inlined_call_operand.hbm [shape: f32[32,32], index: 4, kind: input, shape index: {}]
  %s5 = inlined_call_operand.hbm [shape: f32[32,32], index: 5, kind: input, shape index: {}]
  %s6 = inlined_call_operand.vmem [shape: f32[1,32], index: 6, kind: input, shape index: {}]
  %s7 = inlined_call_operand.hbm [shape: f32[32,32], index: 7, kind: input, shape index: {}]
  %s8 = inlined_call_operand.vmem [shape: f32[1,32], index: 8, kind: input, shape index: {}]
  %s9 = inlined_call_operand.hbm [shape: f32[32,32], index: 9, kind: input, shape index: {}]
  %s10 = inlined_call_operand.vmem [shape: f32[1,32], index: 10, kind: input, shape index: {}]
  %s11 = inlined_call_operand.vmem [shape: f32[32,16], index: 11, kind: input, shape index: {}]
  %s12 = inlined_call_operand.vmem [shape: f32[1,16], index: 12, kind: input, shape index: {}]
  %s13 = inlined_call_operand.hbm [shape: f32[2,16], index: 13, kind: output, shape index: {}]
  %s14 = sld [smem:[#allocation0]]
  $region86: #{tpu_custom_call.1} parent=0
    _
  %s16 = ssub.s32 1, %s14
  %s17 = scalar_select 0, %s16, %s14
  $region1: #{tpu_custom_call.1} parent=0
    #allocation2 [shape = 'u8[8192]{0}', space=vmem, size = 0x2000, scoped, tag = 'input window, operand 1, single buffered']
    #allocation3 [shape = 's32[1]{0}', space=sflag, size = 0x4, scoped, tag = 'scoped memory for tpu_custom_call.1']
    #allocation4 [shape = 's32[1]{0}', space=sflag, size = 0x4, scoped, tag = 'scoped memory for tpu_custom_call.1']
    #allocation5 [shape = 'u8[8192]{0}', space=vmem, size = 0x2000, scoped, tag = 'input window, operand 2, single buffered']
    #allocation6 [shape = 's32[1]{0}', space=sflag, size = 0x4, scoped, tag = 'scoped memory for tpu_custom_call.1']
    #allocation7 [shape = 'u8[16384]{0}', space=vmem, size = 0x4000, scoped, tag = 'input window, operand 4, single buffered']
    #allocation8 [shape = 'u8[16384]{0}', space=vmem, size = 0x4000, scoped, tag = 'input window, operand 5, single buffered']
    #allocation9 [shape = 's32[1]{0}', space=sflag, size = 0x4, scoped, tag = 'scoped memory for tpu_custom_call.1']
    #allocation10 [shape = 'u8[16384]{0}', space=vmem, size = 0x4000, scoped, tag = 'input window, operand 7, single buffered']
    #allocation11 [shape = 'u8[16384]{0}', space=vmem, size = 0x4000, scoped, tag = 'input window, operand 9, single buffered']
    #allocation12 [shape = 's32[1]{0}', space=sflag, size = 0x4, scoped, tag = 'scoped memory for tpu_custom_call.1']
    #allocation13 [shape = 'u8[1024]{0}', space=vmem, size = 0x400, scoped, tag = 'output window, operand 0, single buffered']
    %18 = vsyncpa [#allocation3], 0
    %19 = vsyncpa [#allocation6], 0
    %20 = vsyncpa [#allocation9], 0
    %21 = vsyncpa [#allocation12], 0
    %22 = vsyncpa [#allocation4], 0
    // Predicated region
    $region2: #{tpu_custom_call.1} parent=1 // pred_check
      _
    $region3: #{tpu_custom_call.1} parent=1 // pred_check_branch
      %24 = sbr.rel (0) target = $region5
    $region4: #{tpu_custom_call.1} parent=1 // pred_region
      _
    $region5: #{tpu_custom_call.1} parent=1 // pred_fallthru
      _
    // Predicated region
    $region6: #{tpu_custom_call.1} parent=1 // pred_check
      _
    $region7: #{tpu_custom_call.1} parent=1 // pred_check_branch
      %26 = sbr.rel (0) target = $region9
    $region8: #{tpu_custom_call.1} parent=1 // pred_region
      %28 = vsyncadd [#allocation3], 0
      %s29 = sshll.u32 %s1, 4
      %s30 = int_to_ptr.hbm [resolvable:$true] %s29
      %s31 = sshll.u32 [#allocation2], 4
      %s32 = int_to_ptr.vmem [resolvable:$true] %s31
      %37 = dma.hbm_to_vmem [thread:$0]  %s30, 256, %s32, [#allocation3], 32, 32, 2
    $region9: #{tpu_custom_call.1} parent=1 // pred_fallthru
      _
    // Predicated region
    $region10: #{tpu_custom_call.1} parent=1 // pred_check
      _
    $region11: #{tpu_custom_call.1} parent=1 // pred_check_branch
      %39 = sbr.rel (0) target = $region13
    $region12: #{tpu_custom_call.1} parent=1 // pred_region
      %41 = vsyncadd [#allocation6], 0
      %s42 = sshll.u32 %s2, 4
      %s43 = int_to_ptr.hbm [resolvable:$true] %s42
      %s44 = sshll.u32 [#allocation5], 4
      %s45 = int_to_ptr.vmem [resolvable:$true] %s44
      %50 = dma.hbm_to_vmem [thread:$0]  %s43, 256, %s45, [#allocation6], 32, 32, 2
    $region13: #{tpu_custom_call.1} parent=1 // pred_fallthru
      _
    // Predicated region
    $region14: #{tpu_custom_call.1} parent=1 // pred_check
      _
    $region15: #{tpu_custom_call.1} parent=1 // pred_check_branch
      %52 = sbr.rel (0) target = $region17
    $region16: #{tpu_custom_call.1} parent=1 // pred_region
      _
    $region17: #{tpu_custom_call.1} parent=1 // pred_fallthru
      _
    // Predicated region
    $region18: #{tpu_custom_call.1} parent=1 // pred_check
      _
    $region19: #{tpu_custom_call.1} parent=1 // pred_check_branch
      %54 = sbr.rel (0) target = $region21
    $region20: #{tpu_custom_call.1} parent=1 // pred_region
      %56 = vsyncadd [#allocation6], 0
      %s57 = sshll.u32 %s4, 4
      %s58 = int_to_ptr.hbm [resolvable:$true] %s57
      %s59 = sshll.u32 [#allocation7], 4
      %s60 = int_to_ptr.vmem [resolvable:$true] %s59
      %65 = dma.hbm_to_vmem [thread:$0]  %s58, 512, %s60, [#allocation6], 128, 128, 8
    $region21: #{tpu_custom_call.1} parent=1 // pred_fallthru
      _
    // Predicated region
    $region22: #{tpu_custom_call.1} parent=1 // pred_check
      _
    $region23: #{tpu_custom_call.1} parent=1 // pred_check_branch
      %67 = sbr.rel (0) target = $region25
    $region24: #{tpu_custom_call.1} parent=1 // pred_region
      %69 = vsyncadd [#allocation9], 0
      %s70 = sshll.u32 %s5, 4
      %s71 = int_to_ptr.hbm [resolvable:$true] %s70
      %s72 = sshll.u32 [#allocation8], 4
      %s73 = int_to_ptr.vmem [resolvable:$true] %s72
      %78 = dma.hbm_to_vmem [thread:$0]  %s71, 512, %s73, [#allocation9], 128, 128, 8
    $region25: #{tpu_custom_call.1} parent=1 // pred_fallthru
      _
    // Predicated region
    $region26: #{tpu_custom_call.1} parent=1 // pred_check
      _
    $region27: #{tpu_custom_call.1} parent=1 // pred_check_branch
      %80 = sbr.rel (0) target = $region29
    $region28: #{tpu_custom_call.1} parent=1 // pred_region
      _
    $region29: #{tpu_custom_call.1} parent=1 // pred_fallthru
      _
    // Predicated region
    $region30: #{tpu_custom_call.1} parent=1 // pred_check
      _
    $region31: #{tpu_custom_call.1} parent=1 // pred_check_branch
      %82 = sbr.rel (0) target = $region33
    $region32: #{tpu_custom_call.1} parent=1 // pred_region
      %84 = vsyncadd [#allocation9], 0
      %s85 = sshll.u32 %s7, 4
      %s86 = int_to_ptr.hbm [resolvable:$true] %s85
      %s87 = sshll.u32 [#allocation10], 4
      %s88 = int_to_ptr.vmem [resolvable:$true] %s87
      %93 = dma.hbm_to_vmem [thread:$0]  %s86, 512, %s88, [#allocation9], 128, 128, 8
    $region33: #{tpu_custom_call.1} parent=1 // pred_fallthru
      _
    // Predicated region
    $region34: #{tpu_custom_call.1} parent=1 // pred_check
      _
    $region35: #{tpu_custom_call.1} parent=1 // pred_check_branch
      %95 = sbr.rel (0) target = $region37
    $region36: #{tpu_custom_call.1} parent=1 // pred_region
      _
    $region37: #{tpu_custom_call.1} parent=1 // pred_fallthru
      _
    // Predicated region
    $region38: #{tpu_custom_call.1} parent=1 // pred_check
      _
    $region39: #{tpu_custom_call.1} parent=1 // pred_check_branch
      %97 = sbr.rel (0) target = $region41
    $region40: #{tpu_custom_call.1} parent=1 // pred_region
      %99 = vsyncadd [#allocation12], 0
      %s100 = sshll.u32 %s9, 4
      %s101 = int_to_ptr.hbm [resolvable:$true] %s100
      %s102 = sshll.u32 [#allocation11], 4
      %s103 = int_to_ptr.vmem [resolvable:$true] %s102
      %108 = dma.hbm_to_vmem [thread:$0]  %s101, 512, %s103, [#allocation12], 128, 128, 8
    $region41: #{tpu_custom_call.1} parent=1 // pred_fallthru
      _
    // Predicated region
    $region42: #{tpu_custom_call.1} parent=1 // pred_check
      _
    $region43: #{tpu_custom_call.1} parent=1 // pred_check_branch
      %110 = sbr.rel (0) target = $region45
    $region44: #{tpu_custom_call.1} parent=1 // pred_region
      _
    $region45: #{tpu_custom_call.1} parent=1 // pred_fallthru
      _
    // Predicated region
    $region46: #{tpu_custom_call.1} parent=1 // pred_check
      _
    $region47: #{tpu_custom_call.1} parent=1 // pred_check_branch
      %112 = sbr.rel (0) target = $region49
    $region48: #{tpu_custom_call.1} parent=1 // pred_region
      _
    $region49: #{tpu_custom_call.1} parent=1 // pred_fallthru
      _
    // Predicated region
    $region50: #{tpu_custom_call.1} parent=1 // pred_check
      _
    $region51: #{tpu_custom_call.1} parent=1 // pred_check_branch
      %114 = sbr.rel (0) target = $region53
    $region52: #{tpu_custom_call.1} parent=1 // pred_region
      _
    $region53: #{tpu_custom_call.1} parent=1 // pred_fallthru
      _
    // Predicated region
    $region54: #{tpu_custom_call.1} parent=1 // pred_check
      _
    $region55: #{tpu_custom_call.1} parent=1 // pred_check_branch
      %116 = sbr.rel (0) target = $region57
    $region56: #{tpu_custom_call.1} parent=1 // pred_region
      %118 = dma.done [#allocation3], 256
    $region57: #{tpu_custom_call.1} parent=1 // pred_fallthru
      _
    // Predicated region
    $region58: #{tpu_custom_call.1} parent=1 // pred_check
      _
    $region59: #{tpu_custom_call.1} parent=1 // pred_check_branch
      %120 = sbr.rel (0) target = $region61
    $region60: #{tpu_custom_call.1} parent=1 // pred_region
      %122 = dma.done [#allocation6], 256
    $region61: #{tpu_custom_call.1} parent=1 // pred_fallthru
      _
    // Predicated region
    $region62: #{tpu_custom_call.1} parent=1 // pred_check
      _
    $region63: #{tpu_custom_call.1} parent=1 // pred_check_branch
      %124 = sbr.rel (0) target = $region65
    $region64: #{tpu_custom_call.1} parent=1 // pred_region
      %126 = dma.done [#allocation6], 512
    $region65: #{tpu_custom_call.1} parent=1 // pred_fallthru
      _
    // Predicated region
    $region66: #{tpu_custom_call.1} parent=1 // pred_check
      _
    $region67: #{tpu_custom_call.1} parent=1 // pred_check_branch
      %128 = sbr.rel (0) target = $region69
    $region68: #{tpu_custom_call.1} parent=1 // pred_region
      %130 = dma.done [#allocation9], 512
    $region69: #{tpu_custom_call.1} parent=1 // pred_fallthru
      _
    // Predicated region
    $region70: #{tpu_custom_call.1} parent=1 // pred_check
      _
    $region71: #{tpu_custom_call.1} parent=1 // pred_check_branch
      %132 = sbr.rel (0) target = $region73
    $region72: #{tpu_custom_call.1} parent=1 // pred_region
      %134 = dma.done [#allocation9], 512
    $region73: #{tpu_custom_call.1} parent=1 // pred_fallthru
      _
    // Predicated region
    $region74: #{tpu_custom_call.1} parent=1 // pred_check
      _
    $region75: #{tpu_custom_call.1} parent=1 // pred_check_branch
      %136 = sbr.rel (0) target = $region77
    $region76: #{tpu_custom_call.1} parent=1 // pred_region
      %138 = dma.done [#allocation12], 512
    $region77: #{tpu_custom_call.1} parent=1 // pred_fallthru
      _
    %v139 = vld [vmem:[%s3] sm:$0xff]
    %v140 = vld [vmem:[%s3 + $0x8] sm:$0xff]
    %v141 = vld [vmem:[%s3 + $0x10] sm:$0xff]
    %v142 = vld [vmem:[%s3 + $0x18] sm:$0xff]
    %v143 = vld [vmem:[#allocation7] sm:$0xff]
    %v144 = vld [vmem:[#allocation7 + $0x8] sm:$0xff]
    %v145 = vld [vmem:[#allocation7 + $0x10] sm:$0xff]
    %v146 = vld [vmem:[#allocation7 + $0x18] sm:$0xff]
    %v147 = vld [vmem:[#allocation8] sm:$0xff]
    %v148 = vld [vmem:[#allocation8 + $0x8] sm:$0xff]
    %v149 = vld [vmem:[#allocation8 + $0x10] sm:$0xff]
    %v150 = vld [vmem:[#allocation8 + $0x18] sm:$0xff]
    %v151 = vld [vmem:[%s6] sm:$0x1]
    %v153 = vperm.slane %v151, 0
    %v155 = vld [vmem:[%s0] sm:$0x3]
    %vm156 = vcmask 261120
    %v158 = vsel %vm156, 0.0, 0
    %160 = vmatpush.msra.mxu0 0.0
    %161 = vmatpush.msra.mxu0 0.0
    %162 = vmatpush.msra.mxu0 0.0
    %163 = vmatpush.msra.mxu0 0.0
    %164 = vmatpush.msra.mxu0 0.0
    %165 = vmatpush.msra.mxu0 0.0
    %166 = vmatpush.msra.mxu0 0.0
    %167 = vmatpush.msra.mxu0 0.0
    %168 = vmatpush.msra.mxu0 0.0
    %169 = vmatpush.msra.mxu0 0.0
    %170 = vmatpush.msra.mxu0 0.0
    %171 = vmatpush.msra.mxu0 0.0
    %172 = vmatpush.msra.mxu0 %v142
    %173 = vmatpush.msra.mxu0 %v141
    %174 = vmatpush.msra.mxu0 %v140
    %175 = vmatpush.msra.mxu0 %v139
    %176 = vmatmul.f32.gmra.mxu0 %v158
    %v177 = vpop.f32.mrf.mxu0
    %v178 = vadd.f32 0.0, %v177
    %179 = vdwg.mxu0
    %v180 = vadd.f32 %v155, %v178
    %v181 = vxor.u32 %v180, 2147483648
    %v182 = vmul.f32 %v181, 1.442695
    %v183 = vpow.pop %v182
    %v184 = vadd.f32 %v183, 1.0
    %v185 = vrcp.pop %v184
    %v186 = vmul.f32 %v184, %v185
    %v187 = vsub.f32 1.0, %v186
    %v188 = vmul.f32 %v185, %v187
    %v189 = vadd.f32 %v185, %v188
    %vm190 = vweird.f32 %v184
    %vm191 = vweird.f32 %v185
    %vm192 = vmor %vm190, %vm191
    %v193 = vsel %vm192, %v185, %v189
    %v194 = vand.u32 2147483647, %v184
    %vm195 = vcmp.eq.f32.partialorder %v194, 8.507059e+37
    %v196 = vand.u32 %v184, 2147483648
    %v197 = vor.u32 1.1754944e-38, %v196
    %v198 = vsel %vm195, %v197, %v193
    %v199 = vmul.f32 1.0, %v198
    %v200 = vld [vmem:[#allocation2] sm:$0x3]
    %201 = vmatpush.msra.mxu0 0.0
    %202 = vmatpush.msra.mxu0 0.0
    %203 = vmatpush.msra.mxu0 0.0
    %204 = vmatpush.msra.mxu0 0.0
    %205 = vmatpush.msra.mxu0 0.0
    %206 = vmatpush.msra.mxu0 0.0
    %207 = vmatpush.msra.mxu0 0.0
    %208 = vmatpush.msra.mxu0 0.0
    %209 = vmatpush.msra.mxu0 0.0
    %210 = vmatpush.msra.mxu0 0.0
    %211 = vmatpush.msra.mxu0 0.0
    %212 = vmatpush.msra.mxu0 0.0
    %213 = vmatpush.msra.mxu0 %v146
    %214 = vmatpush.msra.mxu0 %v145
    %215 = vmatpush.msra.mxu0 %v144
    %216 = vmatpush.msra.mxu0 %v143
    %217 = vmatmul.f32.gmra.mxu0 %v158
    %v218 = vpop.f32.mrf.mxu0
    %v219 = vadd.f32 0.0, %v218
    %220 = vdwg.mxu0
    %v221 = vadd.f32 %v200, %v219
    %v222 = vxor.u32 %v221, 2147483648
    %v223 = vmul.f32 %v222, 1.442695
    %v224 = vpow.pop %v223
    %v225 = vadd.f32 %v224, 1.0
    %v226 = vrcp.pop %v225
    %v227 = vmul.f32 %v225, %v226
    %v228 = vsub.f32 1.0, %v227
    %v229 = vmul.f32 %v226, %v228
    %v230 = vadd.f32 %v226, %v229
    %vm231 = vweird.f32 %v225
    %vm232 = vweird.f32 %v226
    %vm233 = vmor %vm231, %vm232
    %v234 = vsel %vm233, %v226, %v230
    %v235 = vand.u32 2147483647, %v225
    %vm236 = vcmp.eq.f32.partialorder %v235, 8.507059e+37
    %v237 = vand.u32 %v225, 2147483648
    %v238 = vor.u32 1.1754944e-38, %v237
    %v239 = vsel %vm236, %v238, %v234
    %v240 = vmul.f32 1.0, %v239
    %v241 = vld [vmem:[#allocation5] sm:$0x3]
    %242 = vmatpush.msra.mxu0 0.0
    %243 = vmatpush.msra.mxu0 0.0
    %244 = vmatpush.msra.mxu0 0.0
    %245 = vmatpush.msra.mxu0 0.0
    %246 = vmatpush.msra.mxu0 0.0
    %247 = vmatpush.msra.mxu0 0.0
    %248 = vmatpush.msra.mxu0 0.0
    %249 = vmatpush.msra.mxu0 0.0
    %250 = vmatpush.msra.mxu0 0.0
    %251 = vmatpush.msra.mxu0 0.0
    %252 = vmatpush.msra.mxu0 0.0
    %253 = vmatpush.msra.mxu0 0.0
    %254 = vmatpush.msra.mxu0 %v150
    %255 = vmatpush.msra.mxu0 %v149
    %256 = vmatpush.msra.mxu0 %v148
    %257 = vmatpush.msra.mxu0 %v147
    %258 = vmatmul.f32.gmra.mxu0 %v158
    %v259 = vpop.f32.mrf.mxu0
    %v260 = vadd.f32 %v153, %v259
    %261 = vdwg.mxu0
    %v262 = vmul.f32 %v199, %v260
    %v263 = vadd.f32 %v241, %v262
    %v264 = vtanh.pop %v263
    %v265 = vsub.f32 1.0, %v240
    %v266 = vmul.f32 %v265, %v264
    %v267 = vmul.f32 %v240, 0.0
    %v268 = vadd.f32 %v266, %v267
    %s269 = scalar_lea.vmem %s0, 2
    %v270 = vld [vmem:[%s269] sm:$0x3]
    %v272 = vsel %vm156, %v268, 0
    %274 = vmatpush.msra.mxu0 0.0
    %275 = vmatpush.msra.mxu0 0.0
    %276 = vmatpush.msra.mxu0 0.0
    %277 = vmatpush.msra.mxu0 0.0
    %278 = vmatpush.msra.mxu0 0.0
    %279 = vmatpush.msra.mxu0 0.0
    %280 = vmatpush.msra.mxu0 0.0
    %281 = vmatpush.msra.mxu0 0.0
    %282 = vmatpush.msra.mxu0 0.0
    %283 = vmatpush.msra.mxu0 0.0
    %284 = vmatpush.msra.mxu0 0.0
    %285 = vmatpush.msra.mxu0 0.0
    %286 = vmatpush.msra.mxu0 %v142
    %287 = vmatpush.msra.mxu0 %v141
    %288 = vmatpush.msra.mxu0 %v140
    %289 = vmatpush.msra.mxu0 %v139
    %290 = vmatmul.f32.gmra.mxu0 %v272
    %v291 = vpop.f32.mrf.mxu0
    %v292 = vadd.f32 0.0, %v291
    %293 = vdwg.mxu0
    %v294 = vadd.f32 %v270, %v292
    %v295 = vxor.u32 %v294, 2147483648
    %v296 = vmul.f32 %v295, 1.442695
    %v297 = vpow.pop %v296
    %v298 = vadd.f32 %v297, 1.0
    %v299 = vrcp.pop %v298
    %v300 = vmul.f32 %v298, %v299
    %v301 = vsub.f32 1.0, %v300
    %v302 = vmul.f32 %v299, %v301
    %v303 = vadd.f32 %v299, %v302
    %vm304 = vweird.f32 %v298
    %vm305 = vweird.f32 %v299
    %vm306 = vmor %vm304, %vm305
    %v307 = vsel %vm306, %v299, %v303
    %v308 = vand.u32 2147483647, %v298
    %vm309 = vcmp.eq.f32.partialorder %v308, 8.507059e+37
    %v310 = vand.u32 %v298, 2147483648
    %v311 = vor.u32 1.1754944e-38, %v310
    %v312 = vsel %vm309, %v311, %v307
    %v313 = vmul.f32 1.0, %v312
    %s314 = scalar_lea.vmem [#allocation2], 2
    %v315 = vld [vmem:[%s314] sm:$0x3]
    %316 = vmatpush.msra.mxu0 0.0
    %317 = vmatpush.msra.mxu0 0.0
    %318 = vmatpush.msra.mxu0 0.0
    %319 = vmatpush.msra.mxu0 0.0
    %320 = vmatpush.msra.mxu0 0.0
    %321 = vmatpush.msra.mxu0 0.0
    %322 = vmatpush.msra.mxu0 0.0
    %323 = vmatpush.msra.mxu0 0.0
    %324 = vmatpush.msra.mxu0 0.0
    %325 = vmatpush.msra.mxu0 0.0
    %326 = vmatpush.msra.mxu0 0.0
    %327 = vmatpush.msra.mxu0 0.0
    %328 = vmatpush.msra.mxu0 %v146
    %329 = vmatpush.msra.mxu0 %v145
    %330 = vmatpush.msra.mxu0 %v144
    %331 = vmatpush.msra.mxu0 %v143
    %332 = vmatmul.f32.gmra.mxu0 %v272
    %v333 = vpop.f32.mrf.mxu0
    %v334 = vadd.f32 0.0, %v333
    %335 = vdwg.mxu0
    %v336 = vadd.f32 %v315, %v334
    %v337 = vxor.u32 %v336, 2147483648
    %v338 = vmul.f32 %v337, 1.442695
    %v339 = vpow.pop %v338
    %v340 = vadd.f32 %v339, 1.0
    %v341 = vrcp.pop %v340
    %v342 = vmul.f32 %v340, %v341
    %v343 = vsub.f32 1.0, %v342
    %v344 = vmul.f32 %v341, %v343
    %v345 = vadd.f32 %v341, %v344
    %vm346 = vweird.f32 %v340
    %vm347 = vweird.f32 %v341
    %vm348 = vmor %vm346, %vm347
    %v349 = vsel %vm348, %v341, %v345
    %v350 = vand.u32 2147483647, %v340
    %vm351 = vcmp.eq.f32.partialorder %v350, 8.507059e+37
    %v352 = vand.u32 %v340, 2147483648
    %v353 = vor.u32 1.1754944e-38, %v352
    %v354 = vsel %vm351, %v353, %v349
    %v355 = vmul.f32 1.0, %v354
    %s356 = scalar_lea.vmem [#allocation5], 2
    %v357 = vld [vmem:[%s356] sm:$0x3]
    %358 = vmatpush.msra.mxu0 0.0
    %359 = vmatpush.msra.mxu0 0.0
    %360 = vmatpush.msra.mxu0 0.0
    %361 = vmatpush.msra.mxu0 0.0
    %362 = vmatpush.msra.mxu0 0.0
    %363 = vmatpush.msra.mxu0 0.0
    %364 = vmatpush.msra.mxu0 0.0
    %365 = vmatpush.msra.mxu0 0.0
    %366 = vmatpush.msra.mxu0 0.0
    %367 = vmatpush.msra.mxu0 0.0
    %368 = vmatpush.msra.mxu0 0.0
    %369 = vmatpush.msra.mxu0 0.0
    %370 = vmatpush.msra.mxu0 %v150
    %371 = vmatpush.msra.mxu0 %v149
    %372 = vmatpush.msra.mxu0 %v148
    %373 = vmatpush.msra.mxu0 %v147
    %374 = vmatmul.f32.gmra.mxu0 %v272
    %v375 = vpop.f32.mrf.mxu0
    %v376 = vadd.f32 %v153, %v375
    %377 = vdwg.mxu0
    %v378 = vmul.f32 %v313, %v376
    %v379 = vadd.f32 %v357, %v378
    %v380 = vtanh.pop %v379
    %v381 = vsub.f32 1.0, %v355
    %v382 = vmul.f32 %v381, %v380
    %v383 = vmul.f32 %v355, %v268
    %v384 = vadd.f32 %v382, %v383
    %s385 = scalar_lea.vmem %s0, 4
    %v386 = vld [vmem:[%s385] sm:$0x3]
    %v388 = vsel %vm156, %v384, 0
    %390 = vmatpush.msra.mxu0 0.0
    %391 = vmatpush.msra.mxu0 0.0
    %392 = vmatpush.msra.mxu0 0.0
    %393 = vmatpush.msra.mxu0 0.0
    %394 = vmatpush.msra.mxu0 0.0
    %395 = vmatpush.msra.mxu0 0.0
    %396 = vmatpush.msra.mxu0 0.0
    %397 = vmatpush.msra.mxu0 0.0
    %398 = vmatpush.msra.mxu0 0.0
    %399 = vmatpush.msra.mxu0 0.0
    %400 = vmatpush.msra.mxu0 0.0
    %401 = vmatpush.msra.mxu0 0.0
    %402 = vmatpush.msra.mxu0 %v142
    %403 = vmatpush.msra.mxu0 %v141
    %404 = vmatpush.msra.mxu0 %v140
    %405 = vmatpush.msra.mxu0 %v139
    %406 = vmatmul.f32.gmra.mxu0 %v388
    %v407 = vpop.f32.mrf.mxu0
    %v408 = vadd.f32 0.0, %v407
    %409 = vdwg.mxu0
    %v410 = vadd.f32 %v386, %v408
    %v411 = vxor.u32 %v410, 2147483648
    %v412 = vmul.f32 %v411, 1.442695
    %v413 = vpow.pop %v412
    %v414 = vadd.f32 %v413, 1.0
    %v415 = vrcp.pop %v414
    %v416 = vmul.f32 %v414, %v415
    %v417 = vsub.f32 1.0, %v416
    %v418 = vmul.f32 %v415, %v417
    %v419 = vadd.f32 %v415, %v418
    %vm420 = vweird.f32 %v414
    %vm421 = vweird.f32 %v415
    %vm422 = vmor %vm420, %vm421
    %v423 = vsel %vm422, %v415, %v419
    %v424 = vand.u32 2147483647, %v414
    %vm425 = vcmp.eq.f32.partialorder %v424, 8.507059e+37
    %v426 = vand.u32 %v414, 2147483648
    %v427 = vor.u32 1.1754944e-38, %v426
    %v428 = vsel %vm425, %v427, %v423
    %v429 = vmul.f32 1.0, %v428
    %s430 = scalar_lea.vmem [#allocation2], 4
    %v431 = vld [vmem:[%s430] sm:$0x3]
    %432 = vmatpush.msra.mxu0 0.0
    %433 = vmatpush.msra.mxu0 0.0
    %434 = vmatpush.msra.mxu0 0.0
    %435 = vmatpush.msra.mxu0 0.0
    %436 = vmatpush.msra.mxu0 0.0
    %437 = vmatpush.msra.mxu0 0.0
    %438 = vmatpush.msra.mxu0 0.0
    %439 = vmatpush.msra.mxu0 0.0
    %440 = vmatpush.msra.mxu0 0.0
    %441 = vmatpush.msra.mxu0 0.0
    %442 = vmatpush.msra.mxu0 0.0
    %443 = vmatpush.msra.mxu0 0.0
    %444 = vmatpush.msra.mxu0 %v146
    %445 = vmatpush.msra.mxu0 %v145
    %446 = vmatpush.msra.mxu0 %v144
    %447 = vmatpush.msra.mxu0 %v143
    %448 = vmatmul.f32.gmra.mxu0 %v388
    %v449 = vpop.f32.mrf.mxu0
    %v450 = vadd.f32 0.0, %v449
    %451 = vdwg.mxu0
    %v452 = vadd.f32 %v431, %v450
    %v453 = vxor.u32 %v452, 2147483648
    %v454 = vmul.f32 %v453, 1.442695
    %v455 = vpow.pop %v454
    %v456 = vadd.f32 %v455, 1.0
    %v457 = vrcp.pop %v456
    %v458 = vmul.f32 %v456, %v457
    %v459 = vsub.f32 1.0, %v458
    %v460 = vmul.f32 %v457, %v459
    %v461 = vadd.f32 %v457, %v460
    %vm462 = vweird.f32 %v456
    %vm463 = vweird.f32 %v457
    %vm464 = vmor %vm462, %vm463
    %v465 = vsel %vm464, %v457, %v461
    %v466 = vand.u32 2147483647, %v456
    %vm467 = vcmp.eq.f32.partialorder %v466, 8.507059e+37
    %v468 = vand.u32 %v456, 2147483648
    %v469 = vor.u32 1.1754944e-38, %v468
    %v470 = vsel %vm467, %v469, %v465
    %v471 = vmul.f32 1.0, %v470
    %s472 = scalar_lea.vmem [#allocation5], 4
    %v473 = vld [vmem:[%s472] sm:$0x3]
    %474 = vmatpush.msra.mxu0 0.0
    %475 = vmatpush.msra.mxu0 0.0
    %476 = vmatpush.msra.mxu0 0.0
    %477 = vmatpush.msra.mxu0 0.0
    %478 = vmatpush.msra.mxu0 0.0
    %479 = vmatpush.msra.mxu0 0.0
    %480 = vmatpush.msra.mxu0 0.0
    %481 = vmatpush.msra.mxu0 0.0
    %482 = vmatpush.msra.mxu0 0.0
    %483 = vmatpush.msra.mxu0 0.0
    %484 = vmatpush.msra.mxu0 0.0
    %485 = vmatpush.msra.mxu0 0.0
    %486 = vmatpush.msra.mxu0 %v150
    %487 = vmatpush.msra.mxu0 %v149
    %488 = vmatpush.msra.mxu0 %v148
    %489 = vmatpush.msra.mxu0 %v147
    %490 = vmatmul.f32.gmra.mxu0 %v388
    %v491 = vpop.f32.mrf.mxu0
    %v492 = vadd.f32 %v153, %v491
    %493 = vdwg.mxu0
    %v494 = vmul.f32 %v429, %v492
    %v495 = vadd.f32 %v473, %v494
    %v496 = vtanh.pop %v495
    %v497 = vsub.f32 1.0, %v471
    %v498 = vmul.f32 %v497, %v496
    %v499 = vmul.f32 %v471, %v384
    %v500 = vadd.f32 %v498, %v499
    %s501 = scalar_lea.vmem %s0, 6
    %v502 = vld [vmem:[%s501] sm:$0x3]
    %v504 = vsel %vm156, %v500, 0
    %506 = vmatpush.msra.mxu0 0.0
    %507 = vmatpush.msra.mxu0 0.0
    %508 = vmatpush.msra.mxu0 0.0
    %509 = vmatpush.msra.mxu0 0.0
    %510 = vmatpush.msra.mxu0 0.0
    %511 = vmatpush.msra.mxu0 0.0
    %512 = vmatpush.msra.mxu0 0.0
    %513 = vmatpush.msra.mxu0 0.0
    %514 = vmatpush.msra.mxu0 0.0
    %515 = vmatpush.msra.mxu0 0.0
    %516 = vmatpush.msra.mxu0 0.0
    %517 = vmatpush.msra.mxu0 0.0
    %518 = vmatpush.msra.mxu0 %v142
    %519 = vmatpush.msra.mxu0 %v141
    %520 = vmatpush.msra.mxu0 %v140
    %521 = vmatpush.msra.mxu0 %v139
    %522 = vmatmul.f32.gmra.mxu0 %v504
    %v523 = vpop.f32.mrf.mxu0
    %v524 = vadd.f32 0.0, %v523
    %525 = vdwg.mxu0
    %v526 = vadd.f32 %v502, %v524
    %v527 = vxor.u32 %v526, 2147483648
    %v528 = vmul.f32 %v527, 1.442695
    %v529 = vpow.pop %v528
    %v530 = vadd.f32 %v529, 1.0
    %v531 = vrcp.pop %v530
    %v532 = vmul.f32 %v530, %v531
    %v533 = vsub.f32 1.0, %v532
    %v534 = vmul.f32 %v531, %v533
    %v535 = vadd.f32 %v531, %v534
    %vm536 = vweird.f32 %v530
    %vm537 = vweird.f32 %v531
    %vm538 = vmor %vm536, %vm537
    %v539 = vsel %vm538, %v531, %v535
    %v540 = vand.u32 2147483647, %v530
    %vm541 = vcmp.eq.f32.partialorder %v540, 8.507059e+37
    %v542 = vand.u32 %v530, 2147483648
    %v543 = vor.u32 1.1754944e-38, %v542
    %v544 = vsel %vm541, %v543, %v539
    %v545 = vmul.f32 1.0, %v544
    %s546 = scalar_lea.vmem [#allocation2], 6
    %v547 = vld [vmem:[%s546] sm:$0x3]
    %548 = vmatpush.msra.mxu0 0.0
    %549 = vmatpush.msra.mxu0 0.0
    %550 = vmatpush.msra.mxu0 0.0
    %551 = vmatpush.msra.mxu0 0.0
    %552 = vmatpush.msra.mxu0 0.0
    %553 = vmatpush.msra.mxu0 0.0
    %554 = vmatpush.msra.mxu0 0.0
    %555 = vmatpush.msra.mxu0 0.0
    %556 = vmatpush.msra.mxu0 0.0
    %557 = vmatpush.msra.mxu0 0.0
    %558 = vmatpush.msra.mxu0 0.0
    %559 = vmatpush.msra.mxu0 0.0
    %560 = vmatpush.msra.mxu0 %v146
    %561 = vmatpush.msra.mxu0 %v145
    %562 = vmatpush.msra.mxu0 %v144
    %563 = vmatpush.msra.mxu0 %v143
    %564 = vmatmul.f32.gmra.mxu0 %v504
    %v565 = vpop.f32.mrf.mxu0
    %v566 = vadd.f32 0.0, %v565
    %567 = vdwg.mxu0
    %v568 = vadd.f32 %v547, %v566
    %v569 = vxor.u32 %v568, 2147483648
    %v570 = vmul.f32 %v569, 1.442695
    %v571 = vpow.pop %v570
    %v572 = vadd.f32 %v571, 1.0
    %v573 = vrcp.pop %v572
    %v574 = vmul.f32 %v572, %v573
    %v575 = vsub.f32 1.0, %v574
    %v576 = vmul.f32 %v573, %v575
    %v577 = vadd.f32 %v573, %v576
    %vm578 = vweird.f32 %v572
    %vm579 = vweird.f32 %v573
    %vm580 = vmor %vm578, %vm579
    %v581 = vsel %vm580, %v573, %v577
    %v582 = vand.u32 2147483647, %v572
    %vm583 = vcmp.eq.f32.partialorder %v582, 8.507059e+37
    %v584 = vand.u32 %v572, 2147483648
    %v585 = vor.u32 1.1754944e-38, %v584
    %v586 = vsel %vm583, %v585, %v581
    %v587 = vmul.f32 1.0, %v586
    %s588 = scalar_lea.vmem [#allocation5], 6
    %v589 = vld [vmem:[%s588] sm:$0x3]
    %590 = vmatpush.msra.mxu0 0.0
    %591 = vmatpush.msra.mxu0 0.0
    %592 = vmatpush.msra.mxu0 0.0
    %593 = vmatpush.msra.mxu0 0.0
    %594 = vmatpush.msra.mxu0 0.0
    %595 = vmatpush.msra.mxu0 0.0
    %596 = vmatpush.msra.mxu0 0.0
    %597 = vmatpush.msra.mxu0 0.0
    %598 = vmatpush.msra.mxu0 0.0
    %599 = vmatpush.msra.mxu0 0.0
    %600 = vmatpush.msra.mxu0 0.0
    %601 = vmatpush.msra.mxu0 0.0
    %602 = vmatpush.msra.mxu0 %v150
    %603 = vmatpush.msra.mxu0 %v149
    %604 = vmatpush.msra.mxu0 %v148
    %605 = vmatpush.msra.mxu0 %v147
    %606 = vmatmul.f32.gmra.mxu0 %v504
    %v607 = vpop.f32.mrf.mxu0
    %v608 = vadd.f32 %v153, %v607
    %609 = vdwg.mxu0
    %v610 = vmul.f32 %v545, %v608
    %v611 = vadd.f32 %v589, %v610
    %v612 = vtanh.pop %v611
    %v613 = vsub.f32 1.0, %v587
    %v614 = vmul.f32 %v613, %v612
    %v615 = vmul.f32 %v587, %v500
    %v616 = vadd.f32 %v614, %v615
    %s617 = scalar_lea.vmem %s0, 8
    %v618 = vld [vmem:[%s617] sm:$0x3]
    %v620 = vsel %vm156, %v616, 0
    %622 = vmatpush.msra.mxu0 0.0
    %623 = vmatpush.msra.mxu0 0.0
    %624 = vmatpush.msra.mxu0 0.0
    %625 = vmatpush.msra.mxu0 0.0
    %626 = vmatpush.msra.mxu0 0.0
    %627 = vmatpush.msra.mxu0 0.0
    %628 = vmatpush.msra.mxu0 0.0
    %629 = vmatpush.msra.mxu0 0.0
    %630 = vmatpush.msra.mxu0 0.0
    %631 = vmatpush.msra.mxu0 0.0
    %632 = vmatpush.msra.mxu0 0.0
    %633 = vmatpush.msra.mxu0 0.0
    %634 = vmatpush.msra.mxu0 %v142
    %635 = vmatpush.msra.mxu0 %v141
    %636 = vmatpush.msra.mxu0 %v140
    %637 = vmatpush.msra.mxu0 %v139
    %638 = vmatmul.f32.gmra.mxu0 %v620
    %v639 = vpop.f32.mrf.mxu0
    %v640 = vadd.f32 0.0, %v639
    %641 = vdwg.mxu0
    %v642 = vadd.f32 %v618, %v640
    %v643 = vxor.u32 %v642, 2147483648
    %v644 = vmul.f32 %v643, 1.442695
    %v645 = vpow.pop %v644
    %v646 = vadd.f32 %v645, 1.0
    %v647 = vrcp.pop %v646
    %v648 = vmul.f32 %v646, %v647
    %v649 = vsub.f32 1.0, %v648
    %v650 = vmul.f32 %v647, %v649
    %v651 = vadd.f32 %v647, %v650
    %vm652 = vweird.f32 %v646
    %vm653 = vweird.f32 %v647
    %vm654 = vmor %vm652, %vm653
    %v655 = vsel %vm654, %v647, %v651
    %v656 = vand.u32 2147483647, %v646
    %vm657 = vcmp.eq.f32.partialorder %v656, 8.507059e+37
    %v658 = vand.u32 %v646, 2147483648
    %v659 = vor.u32 1.1754944e-38, %v658
    %v660 = vsel %vm657, %v659, %v655
    %v661 = vmul.f32 1.0, %v660
    %s662 = scalar_lea.vmem [#allocation2], 8
    %v663 = vld [vmem:[%s662] sm:$0x3]
    %664 = vmatpush.msra.mxu0 0.0
    %665 = vmatpush.msra.mxu0 0.0
    %666 = vmatpush.msra.mxu0 0.0
    %667 = vmatpush.msra.mxu0 0.0
    %668 = vmatpush.msra.mxu0 0.0
    %669 = vmatpush.msra.mxu0 0.0
    %670 = vmatpush.msra.mxu0 0.0
    %671 = vmatpush.msra.mxu0 0.0
    %672 = vmatpush.msra.mxu0 0.0
    %673 = vmatpush.msra.mxu0 0.0
    %674 = vmatpush.msra.mxu0 0.0
    %675 = vmatpush.msra.mxu0 0.0
    %676 = vmatpush.msra.mxu0 %v146
    %677 = vmatpush.msra.mxu0 %v145
    %678 = vmatpush.msra.mxu0 %v144
    %679 = vmatpush.msra.mxu0 %v143
    %680 = vmatmul.f32.gmra.mxu0 %v620
    %v681 = vpop.f32.mrf.mxu0
    %v682 = vadd.f32 0.0, %v681
    %683 = vdwg.mxu0
    %v684 = vadd.f32 %v663, %v682
    %v685 = vxor.u32 %v684, 2147483648
    %v686 = vmul.f32 %v685, 1.442695
    %v687 = vpow.pop %v686
    %v688 = vadd.f32 %v687, 1.0
    %v689 = vrcp.pop %v688
    %v690 = vmul.f32 %v688, %v689
    %v691 = vsub.f32 1.0, %v690
    %v692 = vmul.f32 %v689, %v691
    %v693 = vadd.f32 %v689, %v692
    %vm694 = vweird.f32 %v688
    %vm695 = vweird.f32 %v689
    %vm696 = vmor %vm694, %vm695
    %v697 = vsel %vm696, %v689, %v693
    %v698 = vand.u32 2147483647, %v688
    %vm699 = vcmp.eq.f32.partialorder %v698, 8.507059e+37
    %v700 = vand.u32 %v688, 2147483648
    %v701 = vor.u32 1.1754944e-38, %v700
    %v702 = vsel %vm699, %v701, %v697
    %v703 = vmul.f32 1.0, %v702
    %s704 = scalar_lea.vmem [#allocation5], 8
    %v705 = vld [vmem:[%s704] sm:$0x3]
    %706 = vmatpush.msra.mxu0 0.0
    %707 = vmatpush.msra.mxu0 0.0
    %708 = vmatpush.msra.mxu0 0.0
    %709 = vmatpush.msra.mxu0 0.0
    %710 = vmatpush.msra.mxu0 0.0
    %711 = vmatpush.msra.mxu0 0.0
    %712 = vmatpush.msra.mxu0 0.0
    %713 = vmatpush.msra.mxu0 0.0
    %714 = vmatpush.msra.mxu0 0.0
    %715 = vmatpush.msra.mxu0 0.0
    %716 = vmatpush.msra.mxu0 0.0
    %717 = vmatpush.msra.mxu0 0.0
    %718 = vmatpush.msra.mxu0 %v150
    %719 = vmatpush.msra.mxu0 %v149
    %720 = vmatpush.msra.mxu0 %v148
    %721 = vmatpush.msra.mxu0 %v147
    %722 = vmatmul.f32.gmra.mxu0 %v620
    %v723 = vpop.f32.mrf.mxu0
    %v724 = vadd.f32 %v153, %v723
    %725 = vdwg.mxu0
    %v726 = vmul.f32 %v661, %v724
    %v727 = vadd.f32 %v705, %v726
    %v728 = vtanh.pop %v727
    %v729 = vsub.f32 1.0, %v703
    %v730 = vmul.f32 %v729, %v728
    %v731 = vmul.f32 %v703, %v616
    %v732 = vadd.f32 %v730, %v731
    %s733 = scalar_lea.vmem %s0, 10
    %v734 = vld [vmem:[%s733] sm:$0x3]
    %v736 = vsel %vm156, %v732, 0
    %738 = vmatpush.msra.mxu0 0.0
    %739 = vmatpush.msra.mxu0 0.0
    %740 = vmatpush.msra.mxu0 0.0
    %741 = vmatpush.msra.mxu0 0.0
    %742 = vmatpush.msra.mxu0 0.0
    %743 = vmatpush.msra.mxu0 0.0
    %744 = vmatpush.msra.mxu0 0.0
    %745 = vmatpush.msra.mxu0 0.0
    %746 = vmatpush.msra.mxu0 0.0
    %747 = vmatpush.msra.mxu0 0.0
    %748 = vmatpush.msra.mxu0 0.0
    %749 = vmatpush.msra.mxu0 0.0
    %750 = vmatpush.msra.mxu0 %v142
    %751 = vmatpush.msra.mxu0 %v141
    %752 = vmatpush.msra.mxu0 %v140
    %753 = vmatpush.msra.mxu0 %v139
    %754 = vmatmul.f32.gmra.mxu0 %v736
    %v755 = vpop.f32.mrf.mxu0
    %v756 = vadd.f32 0.0, %v755
    %757 = vdwg.mxu0
    %v758 = vadd.f32 %v734, %v756
    %v759 = vxor.u32 %v758, 2147483648
    %v760 = vmul.f32 %v759, 1.442695
    %v761 = vpow.pop %v760
    %v762 = vadd.f32 %v761, 1.0
    %v763 = vrcp.pop %v762
    %v764 = vmul.f32 %v762, %v763
    %v765 = vsub.f32 1.0, %v764
    %v766 = vmul.f32 %v763, %v765
    %v767 = vadd.f32 %v763, %v766
    %vm768 = vweird.f32 %v762
    %vm769 = vweird.f32 %v763
    %vm770 = vmor %vm768, %vm769
    %v771 = vsel %vm770, %v763, %v767
    %v772 = vand.u32 2147483647, %v762
    %vm773 = vcmp.eq.f32.partialorder %v772, 8.507059e+37
    %v774 = vand.u32 %v762, 2147483648
    %v775 = vor.u32 1.1754944e-38, %v774
    %v776 = vsel %vm773, %v775, %v771
    %v777 = vmul.f32 1.0, %v776
    %s778 = scalar_lea.vmem [#allocation2], 10
    %v779 = vld [vmem:[%s778] sm:$0x3]
    %780 = vmatpush.msra.mxu0 0.0
    %781 = vmatpush.msra.mxu0 0.0
    %782 = vmatpush.msra.mxu0 0.0
    %783 = vmatpush.msra.mxu0 0.0
    %784 = vmatpush.msra.mxu0 0.0
    %785 = vmatpush.msra.mxu0 0.0
    %786 = vmatpush.msra.mxu0 0.0
    %787 = vmatpush.msra.mxu0 0.0
    %788 = vmatpush.msra.mxu0 0.0
    %789 = vmatpush.msra.mxu0 0.0
    %790 = vmatpush.msra.mxu0 0.0
    %791 = vmatpush.msra.mxu0 0.0
    %792 = vmatpush.msra.mxu0 %v146
    %793 = vmatpush.msra.mxu0 %v145
    %794 = vmatpush.msra.mxu0 %v144
    %795 = vmatpush.msra.mxu0 %v143
    %796 = vmatmul.f32.gmra.mxu0 %v736
    %v797 = vpop.f32.mrf.mxu0
    %v798 = vadd.f32 0.0, %v797
    %799 = vdwg.mxu0
    %v800 = vadd.f32 %v779, %v798
    %v801 = vxor.u32 %v800, 2147483648
    %v802 = vmul.f32 %v801, 1.442695
    %v803 = vpow.pop %v802
    %v804 = vadd.f32 %v803, 1.0
    %v805 = vrcp.pop %v804
    %v806 = vmul.f32 %v804, %v805
    %v807 = vsub.f32 1.0, %v806
    %v808 = vmul.f32 %v805, %v807
    %v809 = vadd.f32 %v805, %v808
    %vm810 = vweird.f32 %v804
    %vm811 = vweird.f32 %v805
    %vm812 = vmor %vm810, %vm811
    %v813 = vsel %vm812, %v805, %v809
    %v814 = vand.u32 2147483647, %v804
    %vm815 = vcmp.eq.f32.partialorder %v814, 8.507059e+37
    %v816 = vand.u32 %v804, 2147483648
    %v817 = vor.u32 1.1754944e-38, %v816
    %v818 = vsel %vm815, %v817, %v813
    %v819 = vmul.f32 1.0, %v818
    %s820 = scalar_lea.vmem [#allocation5], 10
    %v821 = vld [vmem:[%s820] sm:$0x3]
    %822 = vmatpush.msra.mxu0 0.0
    %823 = vmatpush.msra.mxu0 0.0
    %824 = vmatpush.msra.mxu0 0.0
    %825 = vmatpush.msra.mxu0 0.0
    %826 = vmatpush.msra.mxu0 0.0
    %827 = vmatpush.msra.mxu0 0.0
    %828 = vmatpush.msra.mxu0 0.0
    %829 = vmatpush.msra.mxu0 0.0
    %830 = vmatpush.msra.mxu0 0.0
    %831 = vmatpush.msra.mxu0 0.0
    %832 = vmatpush.msra.mxu0 0.0
    %833 = vmatpush.msra.mxu0 0.0
    %834 = vmatpush.msra.mxu0 %v150
    %835 = vmatpush.msra.mxu0 %v149
    %836 = vmatpush.msra.mxu0 %v148
    %837 = vmatpush.msra.mxu0 %v147
    %838 = vmatmul.f32.gmra.mxu0 %v736
    %v839 = vpop.f32.mrf.mxu0
    %v840 = vadd.f32 %v153, %v839
    %841 = vdwg.mxu0
    %v842 = vmul.f32 %v777, %v840
    %v843 = vadd.f32 %v821, %v842
    %v844 = vtanh.pop %v843
    %v845 = vsub.f32 1.0, %v819
    %v846 = vmul.f32 %v845, %v844
    %v847 = vmul.f32 %v819, %v732
    %v848 = vadd.f32 %v846, %v847
    %s849 = scalar_lea.vmem %s0, 12
    %v850 = vld [vmem:[%s849] sm:$0x3]
    %v852 = vsel %vm156, %v848, 0
    %854 = vmatpush.msra.mxu0 0.0
    %855 = vmatpush.msra.mxu0 0.0
    %856 = vmatpush.msra.mxu0 0.0
    %857 = vmatpush.msra.mxu0 0.0
    %858 = vmatpush.msra.mxu0 0.0
    %859 = vmatpush.msra.mxu0 0.0
    %860 = vmatpush.msra.mxu0 0.0
    %861 = vmatpush.msra.mxu0 0.0
    %862 = vmatpush.msra.mxu0 0.0
    %863 = vmatpush.msra.mxu0 0.0
    %864 = vmatpush.msra.mxu0 0.0
    %865 = vmatpush.msra.mxu0 0.0
    %866 = vmatpush.msra.mxu0 %v142
    %867 = vmatpush.msra.mxu0 %v141
    %868 = vmatpush.msra.mxu0 %v140
    %869 = vmatpush.msra.mxu0 %v139
    %870 = vmatmul.f32.gmra.mxu0 %v852
    %v871 = vpop.f32.mrf.mxu0
    %v872 = vadd.f32 0.0, %v871
    %873 = vdwg.mxu0
    %v874 = vadd.f32 %v850, %v872
    %v875 = vxor.u32 %v874, 2147483648
    %v876 = vmul.f32 %v875, 1.442695
    %v877 = vpow.pop %v876
    %v878 = vadd.f32 %v877, 1.0
    %v879 = vrcp.pop %v878
    %v880 = vmul.f32 %v878, %v879
    %v881 = vsub.f32 1.0, %v880
    %v882 = vmul.f32 %v879, %v881
    %v883 = vadd.f32 %v879, %v882
    %vm884 = vweird.f32 %v878
    %vm885 = vweird.f32 %v879
    %vm886 = vmor %vm884, %vm885
    %v887 = vsel %vm886, %v879, %v883
    %v888 = vand.u32 2147483647, %v878
    %vm889 = vcmp.eq.f32.partialorder %v888, 8.507059e+37
    %v890 = vand.u32 %v878, 2147483648
    %v891 = vor.u32 1.1754944e-38, %v890
    %v892 = vsel %vm889, %v891, %v887
    %v893 = vmul.f32 1.0, %v892
    %s894 = scalar_lea.vmem [#allocation2], 12
    %v895 = vld [vmem:[%s894] sm:$0x3]
    %896 = vmatpush.msra.mxu0 0.0
    %897 = vmatpush.msra.mxu0 0.0
    %898 = vmatpush.msra.mxu0 0.0
    %899 = vmatpush.msra.mxu0 0.0
    %900 = vmatpush.msra.mxu0 0.0
    %901 = vmatpush.msra.mxu0 0.0
    %902 = vmatpush.msra.mxu0 0.0
    %903 = vmatpush.msra.mxu0 0.0
    %904 = vmatpush.msra.mxu0 0.0
    %905 = vmatpush.msra.mxu0 0.0
    %906 = vmatpush.msra.mxu0 0.0
    %907 = vmatpush.msra.mxu0 0.0
    %908 = vmatpush.msra.mxu0 %v146
    %909 = vmatpush.msra.mxu0 %v145
    %910 = vmatpush.msra.mxu0 %v144
    %911 = vmatpush.msra.mxu0 %v143
    %912 = vmatmul.f32.gmra.mxu0 %v852
    %v913 = vpop.f32.mrf.mxu0
    %v914 = vadd.f32 0.0, %v913
    %915 = vdwg.mxu0
    %v916 = vadd.f32 %v895, %v914
    %v917 = vxor.u32 %v916, 2147483648
    %v918 = vmul.f32 %v917, 1.442695
    %v919 = vpow.pop %v918
    %v920 = vadd.f32 %v919, 1.0
    %v921 = vrcp.pop %v920
    %v922 = vmul.f32 %v920, %v921
    %v923 = vsub.f32 1.0, %v922
    %v924 = vmul.f32 %v921, %v923
    %v925 = vadd.f32 %v921, %v924
    %vm926 = vweird.f32 %v920
    %vm927 = vweird.f32 %v921
    %vm928 = vmor %vm926, %vm927
    %v929 = vsel %vm928, %v921, %v925
    %v930 = vand.u32 2147483647, %v920
    %vm931 = vcmp.eq.f32.partialorder %v930, 8.507059e+37
    %v932 = vand.u32 %v920, 2147483648
    %v933 = vor.u32 1.1754944e-38, %v932
    %v934 = vsel %vm931, %v933, %v929
    %v935 = vmul.f32 1.0, %v934
    %s936 = scalar_lea.vmem [#allocation5], 12
    %v937 = vld [vmem:[%s936] sm:$0x3]
    %938 = vmatpush.msra.mxu0 0.0
    %939 = vmatpush.msra.mxu0 0.0
    %940 = vmatpush.msra.mxu0 0.0
    %941 = vmatpush.msra.mxu0 0.0
    %942 = vmatpush.msra.mxu0 0.0
    %943 = vmatpush.msra.mxu0 0.0
    %944 = vmatpush.msra.mxu0 0.0
    %945 = vmatpush.msra.mxu0 0.0
    %946 = vmatpush.msra.mxu0 0.0
    %947 = vmatpush.msra.mxu0 0.0
    %948 = vmatpush.msra.mxu0 0.0
    %949 = vmatpush.msra.mxu0 0.0
    %950 = vmatpush.msra.mxu0 %v150
    %951 = vmatpush.msra.mxu0 %v149
    %952 = vmatpush.msra.mxu0 %v148
    %953 = vmatpush.msra.mxu0 %v147
    %954 = vmatmul.f32.gmra.mxu0 %v852
    %v955 = vpop.f32.mrf.mxu0
    %v956 = vadd.f32 %v153, %v955
    %957 = vdwg.mxu0
    %v958 = vmul.f32 %v893, %v956
    %v959 = vadd.f32 %v937, %v958
    %v960 = vtanh.pop %v959
    %v961 = vsub.f32 1.0, %v935
    %v962 = vmul.f32 %v961, %v960
    %v963 = vmul.f32 %v935, %v848
    %v964 = vadd.f32 %v962, %v963
    %s965 = scalar_lea.vmem %s0, 14
    %v966 = vld [vmem:[%s965] sm:$0x3]
    %v968 = vsel %vm156, %v964, 0
    %970 = vmatpush.msra.mxu0 0.0
    %971 = vmatpush.msra.mxu0 0.0
    %972 = vmatpush.msra.mxu0 0.0
    %973 = vmatpush.msra.mxu0 0.0
    %974 = vmatpush.msra.mxu0 0.0
    %975 = vmatpush.msra.mxu0 0.0
    %976 = vmatpush.msra.mxu0 0.0
    %977 = vmatpush.msra.mxu0 0.0
    %978 = vmatpush.msra.mxu0 0.0
    %979 = vmatpush.msra.mxu0 0.0
    %980 = vmatpush.msra.mxu0 0.0
    %981 = vmatpush.msra.mxu0 0.0
    %982 = vmatpush.msra.mxu0 %v142
    %983 = vmatpush.msra.mxu0 %v141
    %984 = vmatpush.msra.mxu0 %v140
    %985 = vmatpush.msra.mxu0 %v139
    %986 = vmatmul.f32.gmra.mxu0 %v968
    %v987 = vpop.f32.mrf.mxu0
    %v988 = vadd.f32 0.0, %v987
    %989 = vdwg.mxu0
    %v990 = vadd.f32 %v966, %v988
    %v991 = vxor.u32 %v990, 2147483648
    %v992 = vmul.f32 %v991, 1.442695
    %v993 = vpow.pop %v992
    %v994 = vadd.f32 %v993, 1.0
    %v995 = vrcp.pop %v994
    %v996 = vmul.f32 %v994, %v995
    %v997 = vsub.f32 1.0, %v996
    %v998 = vmul.f32 %v995, %v997
    %v999 = vadd.f32 %v995, %v998
    %vm1000 = vweird.f32 %v994
    %vm1001 = vweird.f32 %v995
    %vm1002 = vmor %vm1000, %vm1001
    %v1003 = vsel %vm1002, %v995, %v999
    %v1004 = vand.u32 2147483647, %v994
    %vm1005 = vcmp.eq.f32.partialorder %v1004, 8.507059e+37
    %v1006 = vand.u32 %v994, 2147483648
    %v1007 = vor.u32 1.1754944e-38, %v1006
    %v1008 = vsel %vm1005, %v1007, %v1003
    %v1009 = vmul.f32 1.0, %v1008
    %s1010 = scalar_lea.vmem [#allocation2], 14
    %v1011 = vld [vmem:[%s1010] sm:$0x3]
    %1012 = vmatpush.msra.mxu0 0.0
    %1013 = vmatpush.msra.mxu0 0.0
    %1014 = vmatpush.msra.mxu0 0.0
    %1015 = vmatpush.msra.mxu0 0.0
    %1016 = vmatpush.msra.mxu0 0.0
    %1017 = vmatpush.msra.mxu0 0.0
    %1018 = vmatpush.msra.mxu0 0.0
    %1019 = vmatpush.msra.mxu0 0.0
    %1020 = vmatpush.msra.mxu0 0.0
    %1021 = vmatpush.msra.mxu0 0.0
    %1022 = vmatpush.msra.mxu0 0.0
    %1023 = vmatpush.msra.mxu0 0.0
    %1024 = vmatpush.msra.mxu0 %v146
    %1025 = vmatpush.msra.mxu0 %v145
    %1026 = vmatpush.msra.mxu0 %v144
    %1027 = vmatpush.msra.mxu0 %v143
    %1028 = vmatmul.f32.gmra.mxu0 %v968
    %v1029 = vpop.f32.mrf.mxu0
    %v1030 = vadd.f32 0.0, %v1029
    %1031 = vdwg.mxu0
    %v1032 = vadd.f32 %v1011, %v1030
    %v1033 = vxor.u32 %v1032, 2147483648
    %v1034 = vmul.f32 %v1033, 1.442695
    %v1035 = vpow.pop %v1034
    %v1036 = vadd.f32 %v1035, 1.0
    %v1037 = vrcp.pop %v1036
    %v1038 = vmul.f32 %v1036, %v1037
    %v1039 = vsub.f32 1.0, %v1038
    %v1040 = vmul.f32 %v1037, %v1039
    %v1041 = vadd.f32 %v1037, %v1040
    %vm1042 = vweird.f32 %v1036
    %vm1043 = vweird.f32 %v1037
    %vm1044 = vmor %vm1042, %vm1043
    %v1045 = vsel %vm1044, %v1037, %v1041
    %v1046 = vand.u32 2147483647, %v1036
    %vm1047 = vcmp.eq.f32.partialorder %v1046, 8.507059e+37
    %v1048 = vand.u32 %v1036, 2147483648
    %v1049 = vor.u32 1.1754944e-38, %v1048
    %v1050 = vsel %vm1047, %v1049, %v1045
    %v1051 = vmul.f32 1.0, %v1050
    %s1052 = scalar_lea.vmem [#allocation5], 14
    %v1053 = vld [vmem:[%s1052] sm:$0x3]
    %1054 = vmatpush.msra.mxu0 0.0
    %1055 = vmatpush.msra.mxu0 0.0
    %1056 = vmatpush.msra.mxu0 0.0
    %1057 = vmatpush.msra.mxu0 0.0
    %1058 = vmatpush.msra.mxu0 0.0
    %1059 = vmatpush.msra.mxu0 0.0
    %1060 = vmatpush.msra.mxu0 0.0
    %1061 = vmatpush.msra.mxu0 0.0
    %1062 = vmatpush.msra.mxu0 0.0
    %1063 = vmatpush.msra.mxu0 0.0
    %1064 = vmatpush.msra.mxu0 0.0
    %1065 = vmatpush.msra.mxu0 0.0
    %1066 = vmatpush.msra.mxu0 %v150
    %1067 = vmatpush.msra.mxu0 %v149
    %1068 = vmatpush.msra.mxu0 %v148
    %1069 = vmatpush.msra.mxu0 %v147
    %1070 = vmatmul.f32.gmra.mxu0 %v968
    %v1071 = vpop.f32.mrf.mxu0
    %v1072 = vadd.f32 %v153, %v1071
    %1073 = vdwg.mxu0
    %v1074 = vmul.f32 %v1009, %v1072
    %v1075 = vadd.f32 %v1053, %v1074
    %v1076 = vtanh.pop %v1075
    %v1077 = vsub.f32 1.0, %v1051
    %v1078 = vmul.f32 %v1077, %v1076
    %v1079 = vmul.f32 %v1051, %v964
    %v1080 = vadd.f32 %v1078, %v1079
    %v1081 = vld [vmem:[#allocation10] sm:$0xff]
    %v1082 = vld [vmem:[#allocation10 + $0x8] sm:$0xff]
    %v1083 = vld [vmem:[#allocation10 + $0x10] sm:$0xff]
    %v1084 = vld [vmem:[#allocation10 + $0x18] sm:$0xff]
    %v1085 = vld [vmem:[%s8] sm:$0x1]
    %v1087 = vperm.slane %v1085, 0
    %v1090 = vsel %vm156, %v1080, 0
    %1092 = vmatpush.msra.mxu0 0.0
    %1093 = vmatpush.msra.mxu0 0.0
    %1094 = vmatpush.msra.mxu0 0.0
    %1095 = vmatpush.msra.mxu0 0.0
    %1096 = vmatpush.msra.mxu0 0.0
    %1097 = vmatpush.msra.mxu0 0.0
    %1098 = vmatpush.msra.mxu0 0.0
    %1099 = vmatpush.msra.mxu0 0.0
    %1100 = vmatpush.msra.mxu0 0.0
    %1101 = vmatpush.msra.mxu0 0.0
    %1102 = vmatpush.msra.mxu0 0.0
    %1103 = vmatpush.msra.mxu0 0.0
    %1104 = vmatpush.msra.mxu0 %v1084
    %1105 = vmatpush.msra.mxu0 %v1083
    %1106 = vmatpush.msra.mxu0 %v1082
    %1107 = vmatpush.msra.mxu0 %v1081
    %1108 = vmatmul.f32.gmra.mxu0 %v1090
    %v1109 = vpop.f32.mrf.mxu0
    %v1110 = vadd.f32 %v1087, %v1109
    %1111 = vdwg.mxu0
    %v1112 = vtanh.pop %v1110
    %v1113 = vld [vmem:[#allocation11] sm:$0xff]
    %v1114 = vld [vmem:[#allocation11 + $0x8] sm:$0xff]
    %v1115 = vld [vmem:[#allocation11 + $0x10] sm:$0xff]
    %v1116 = vld [vmem:[#allocation11 + $0x18] sm:$0xff]
    %v1117 = vld [vmem:[%s10] sm:$0x1]
    %v1119 = vperm.slane %v1117, 0
    %v1122 = vsel %vm156, %v1112, 0
    %1124 = vmatpush.msra.mxu0 0.0
    %1125 = vmatpush.msra.mxu0 0.0
    %1126 = vmatpush.msra.mxu0 0.0
    %1127 = vmatpush.msra.mxu0 0.0
    %1128 = vmatpush.msra.mxu0 0.0
    %1129 = vmatpush.msra.mxu0 0.0
    %1130 = vmatpush.msra.mxu0 0.0
    %1131 = vmatpush.msra.mxu0 0.0
    %1132 = vmatpush.msra.mxu0 0.0
    %1133 = vmatpush.msra.mxu0 0.0
    %1134 = vmatpush.msra.mxu0 0.0
    %1135 = vmatpush.msra.mxu0 0.0
    %1136 = vmatpush.msra.mxu0 %v1116
    %1137 = vmatpush.msra.mxu0 %v1115
    %1138 = vmatpush.msra.mxu0 %v1114
    %1139 = vmatpush.msra.mxu0 %v1113
    %1140 = vmatmul.f32.gmra.mxu0 %v1122
    %v1141 = vpop.f32.mrf.mxu0
    %v1142 = vadd.f32 %v1119, %v1141
    %1143 = vdwg.mxu0
    %v1144 = vtanh.pop %v1142
    %v1145 = vld [vmem:[%s11] sm:$0xff]
    %v1146 = vld [vmem:[%s11 + $0x8] sm:$0xff]
    %v1147 = vld [vmem:[%s11 + $0x10] sm:$0xff]
    %v1148 = vld [vmem:[%s11 + $0x18] sm:$0xff]
    %v1149 = vld [vmem:[%s12] sm:$0x1]
    %v1151 = vperm.slane %v1149, 0
    %v1154 = vsel %vm156, %v1144, 0
    %1156 = vmatpush.msra.mxu0 0.0
    %1157 = vmatpush.msra.mxu0 0.0
    %1158 = vmatpush.msra.mxu0 0.0
    %1159 = vmatpush.msra.mxu0 0.0
    %1160 = vmatpush.msra.mxu0 0.0
    %1161 = vmatpush.msra.mxu0 0.0
    %1162 = vmatpush.msra.mxu0 0.0
    %1163 = vmatpush.msra.mxu0 0.0
    %1164 = vmatpush.msra.mxu0 0.0
    %1165 = vmatpush.msra.mxu0 0.0
    %1166 = vmatpush.msra.mxu0 0.0
    %1167 = vmatpush.msra.mxu0 0.0
    %1168 = vmatpush.msra.mxu0 %v1148
    %1169 = vmatpush.msra.mxu0 %v1147
    %1170 = vmatpush.msra.mxu0 %v1146
    %1171 = vmatpush.msra.mxu0 %v1145
    %1172 = vmatmul.f32.gmra.mxu0 %v1154
    %v1173 = vpop.f32.mrf.mxu0
    %v1174 = vadd.f32 %v1151, %v1173
    %1175 = vdwg.mxu0
    %vm1176 = vcmask 123904
    %1177 = vst.msk [vmem:[#allocation13] sm:$0x3] %vm1176, %v1174
    // Predicated region
    $region78: #{tpu_custom_call.1} parent=1 // pred_check
      _
    $region79: #{tpu_custom_call.1} parent=1 // pred_check_branch
      %1179 = sbr.rel (0) target = $region81
    $region80: #{tpu_custom_call.1} parent=1 // pred_region
      %1181 = vsyncadd [#allocation4], 0
      %s1183 = sshll.u32 [#allocation13], 4
      %s1184 = int_to_ptr.vmem [resolvable:$true] %s1183
      %s1185 = sshll.u32 %s13, 4
      %s1186 = int_to_ptr.hbm [resolvable:$true] %s1185
      %1188 = dma.vmem_to_hbm [thread:$0]  %s1184, 32, %s1186, [#allocation4]
    $region81: #{tpu_custom_call.1} parent=1 // pred_fallthru
      _
    // Predicated region
    $region82: #{tpu_custom_call.1} parent=1 // pred_check
      _
    $region83: #{tpu_custom_call.1} parent=1 // pred_check_branch
      %1190 = sbr.rel (0) target = $region85
    $region84: #{tpu_custom_call.1} parent=1 // pred_region
      %1192 = dma.done [#allocation4], 32
    $region85: #{tpu_custom_call.1} parent=1 // pred_fallthru
      _
    %1193 = vsyncpa [#allocation3], 1
    %1194 = vsyncpa [#allocation6], 1
    %1195 = vsyncpa [#allocation9], 1
    %1196 = vsyncpa [#allocation12], 1
    %1197 = vsyncpa [#allocation4], 1

</llo_original>
